<compile_context>
chip_gen: v5e
topology: v5e:2x2
jax: 0.10.0
libtpu: 0.0.40
codegen_flags: <defaults>
</compile_context>

<pallas_src>
import math
import functools

import jax
import jax.numpy as jnp
from jax.experimental import pallas as pl
from jax.experimental.pallas import tpu as pltpu


def _fourier_kernel(affine_ref, cm_ref, lf_ref, erep_ref, etil_ref, out_ref, *,
                    affine_norm, eps):
    """One (batch, channel-group) tile per grid step.

    affine_ref : SMEM (B, 4) full table -> [r_c, r_s, t_x, t_y] per batch
    cm_ref     : VMEM (dt, S)  = 2*pi * outer(freqs, coords)  (group slice)
    lf_ref     : VMEM (dt, S)  = lf[d] broadcast along lanes  (group slice)
    erep_ref   : VMEM (S, S*S) 0/1: erep[r, k] = (r == k // S)  (row expand)
    etil_ref   : VMEM (S, S*S) 0/1: etil[r, k] = (r == k %  S)  (col expand)
    out_ref    : VMEM (1, 4, dt, S*S) flattened-spatial output block,
                 groups = [sin(ch), cos(ch), sin(cw), cos(cw)]
    """
    b = pl.program_id(0)
    r_c = affine_ref[b, 0]
    r_s = affine_ref[b, 1]
    t_x = affine_ref[b, 2]
    t_y = affine_ref[b, 3]
    if affine_norm:
        inv = 1.0 / (jnp.sqrt(r_c * r_c + r_s * r_s) + eps)
        r_c = r_c * inv
        r_s = r_s * inv
        t_x = t_x * inv
        t_y = t_y * inv

    cm = cm_ref[...]          # (dt, S)
    lf = lf_ref[...]          # (dt, S)
    dt = cm.shape[0]

    rc_cm = cm * r_c
    rs_cm = cm * r_s

    # Angle-addition decomposition (scalar work hoisted to (dt, S) scale):
    #   ch[d, i, j] = A[d, i] + B[d, j]
    #   cw[d, i, j] = P[d, i] + Q[d, j]
    # Stack the two row tables / two col tables so trig + MXU expansion run on
    # (2*dt, S) operands -> half the EUP / MXU dispatches per step.
    ang_i = jnp.concatenate([-rs_cm - t_y * lf,      # A (ch, row-dependent)
                             rc_cm - t_x * lf],      # P (cw, row-dependent)
                            axis=0)                  # (2*dt, S)
    ang_j = jnp.concatenate([rc_cm,                  # B (ch, col-dependent)
                             rs_cm],                 # Q (cw, col-dependent)
                            axis=0)                  # (2*dt, S)

    # Only O(dim * S) transcendentals.
    sin_i, cos_i = jnp.sin(ang_i), jnp.cos(ang_i)
    sin_j, cos_j = jnp.sin(ang_j), jnp.cos(ang_j)

    erep = erep_ref[...]
    etil = etil_ref[...]
    f32 = jnp.float32
    # (2*dt, S) -> (2*dt, S*S):  rep spreads over rows (k // S),
    #                            til tiles over cols  (k %  S).
    rs_ = jnp.dot(sin_i, erep, preferred_element_type=f32)   # rep([sinA; sinP])
    rc_ = jnp.dot(cos_i, erep, preferred_element_type=f32)   # rep([cosA; cosP])
    ts_ = jnp.dot(sin_j, etil, preferred_element_type=f32)   # til([sinB; sinQ])
    tc_ = jnp.dot(cos_j, etil, preferred_element_type=f32)   # til([cosB; cosQ])

    # sin(x+y) / cos(x+y) over the stacked (2*dt, S*S) volume.
    s_out = rs_ * tc_ + rc_ * ts_        # [sin(ch); sin(cw)]
    c_out = rc_ * tc_ - rs_ * ts_        # [cos(ch); cos(cw)]

    od = out_ref.dtype
    out_ref[0, 0] = s_out[0:dt].astype(od)          # sin(ch)
    out_ref[0, 1] = c_out[0:dt].astype(od)          # cos(ch)
    out_ref[0, 2] = s_out[dt:2 * dt].astype(od)     # sin(cw)
    out_ref[0, 3] = c_out[dt:2 * dt].astype(od)     # cos(cw)


def _pick_d4_tile(d4, size):
    """Largest multiple-of-8 divisor of d4 whose output block is <= ~2 MiB."""
    per_freq_bytes = 4 * size * size * 4        # 4 sin/cos groups, f32
    budget = 2 * 1024 * 1024
    if d4 % 8 != 0:
        return d4                               # small dim: use full extent
    best = 8
    for cand in range(8, d4 + 1, 8):
        if d4 % cand == 0 and cand * per_freq_bytes <= budget:
            best = cand
    return best


def fourier_feature(batch_size, size, dim, cutoff,
                    affine=None, affine_norm=True, eps=1e-8,
                    out_dtype=jnp.float32):
    """Pallas implementation of FourierFeature.forward (NCHW output)."""
    assert dim % 4 == 0, "dim must be a multiple of 4"
    d4 = dim // 4

    # Deterministic "buffers" from __init__ (pure glue).
    coords = jnp.linspace(-0.5, 0.5, size + 1)[:-1].astype(jnp.float32)   # (S,)
    freqs = jnp.linspace(0.0, cutoff, d4).astype(jnp.float32)             # (D4,)
    coord_map = 2 * math.pi * jnp.outer(freqs, coords)                    # (D4,S)
    lf_row = jnp.broadcast_to(
        (freqs * 2 * math.pi * 2 / size)[:, None], (d4, size))            # (D4,S)

    # Constant 0/1 expansion matrices: spread (D4,S) tables into the flattened
    # (D4, S*S) volume on the MXU (k = i*S + j, row-major over (H, W)).
    # NOTE: targets the small/medium-S regime; for very large S the natural
    # (..., S, S) layout is already lane-dense and flattening stops paying off.
    kk = jnp.arange(size * size, dtype=jnp.int32)
    rr = jnp.arange(size, dtype=jnp.int32)[:, None]
    e_rep = (rr == (kk // size)[None, :]).astype(jnp.float32)             # (S,S*S)
    e_til = (rr == (kk % size)[None, :]).astype(jnp.float32)              # (S,S*S)

    if affine is None:
        # Output is batch-independent: run one batch, broadcast outside.
        affine_k = jnp.array([[1.0, 0.0, 0.0, 0.0]], jnp.float32)
        norm_flag = False
    else:
        affine_k = affine.astype(jnp.float32)
        assert affine_k.ndim == 2 and affine_k.shape[1] == 4
        norm_flag = bool(affine_norm)
    b_k = affine_k.shape[0]

    d4_tile = _pick_d4_tile(d4, size)
    n_groups = d4 // d4_tile

    kernel = functools.partial(_fourier_kernel, affine_norm=norm_flag,
                               eps=float(eps))

    flat = pl.pallas_call(
        kernel,
        out_shape=jax.ShapeDtypeStruct((b_k, 4, d4, size * size), out_dtype),
        grid_spec=pltpu.PrefetchScalarGridSpec(
            num_scalar_prefetch=0,
            grid=(b_k, n_groups),
            in_specs=[
                # whole (B, 4) affine table in SMEM (scalar reads only)
                pl.BlockSpec(memory_space=pltpu.SMEM),
                pl.BlockSpec((d4_tile, size), lambda b, g: (g, 0)),        # cm
                pl.BlockSpec((d4_tile, size), lambda b, g: (g, 0)),        # lf
                pl.BlockSpec((size, size * size), lambda b, g: (0, 0)),    # e_rep
                pl.BlockSpec((size, size * size), lambda b, g: (0, 0)),    # e_til
            ],
            out_specs=pl.BlockSpec((1, 4, d4_tile, size * size),
                                   lambda b, g: (b, 0, g, 0)),
        ),
        compiler_params=pltpu.CompilerParams(
            dimension_semantics=("parallel", "parallel")),
    )(affine_k, coord_map, lf_row, e_rep, e_til)

    # (B, 4, D4, S*S) -> (B, 4*D4, S, S): channel = group*D4 + d, exactly the
    # torch concat order; spatial reshape recovers row-major (H, W).
    out = flat.reshape(b_k, dim, size, size)
    if affine is None:
        out = jnp.broadcast_to(out, (batch_size, dim, size, size))
    return out


def fourier_feature_ref(batch_size, size, dim, cutoff,
                        affine=None, affine_norm=True, eps=1e-8):
    """Pure-JAX reference mirroring the PyTorch forward exactly."""
    d4 = dim // 4
    coords = jnp.linspace(-0.5, 0.5, size + 1)[:-1].astype(jnp.float32)
    freqs = jnp.linspace(0.0, cutoff, d4).astype(jnp.float32)
    lf = freqs.reshape(1, d4, 1, 1) * 2 * math.pi * 2 / size
    coord_map = 2 * math.pi * jnp.outer(freqs, coords)
    coord_h = coord_map.reshape(d4, 1, size)
    coord_w = jnp.transpose(coord_h, (0, 2, 1))
    if affine is not None:
        if affine_norm:
            norm = jnp.linalg.norm(affine[:, :2], axis=-1, keepdims=True)
            affine = affine / (norm + eps)
        a = affine.reshape(affine.shape[0], 1, 1, 1, affine.shape[-1])
        r_c, r_s, t_x, t_y = (a[..., i] for i in range(4))
        ch0 = coord_h[None]
        cw0 = coord_w[None]
        ch = -cw0 * r_s + ch0 * r_c - t_y * lf
        cw = cw0 * r_c + ch0 * r_s - t_x * lf
        ch = jnp.concatenate([jnp.sin(ch), jnp.cos(ch)], axis=1)
        cw = jnp.concatenate([jnp.sin(cw), jnp.cos(cw)], axis=1)
        return jnp.concatenate([ch, cw], axis=1)
    else:
        ch = jnp.concatenate([jnp.sin(coord_h), jnp.cos(coord_h)], axis=0)
        cw = jnp.concatenate([jnp.sin(coord_w), jnp.cos(coord_w)], axis=0)
        ch = jnp.broadcast_to(ch, (2 * d4, size, size))
        cw = jnp.broadcast_to(cw, (2 * d4, size, size))
        out = jnp.concatenate([ch, cw], axis=0)
        return jnp.broadcast_to(out[None], (batch_size, dim, size, size))


if __name__ == "__main__":
    size, dim, cutoff, batch = 16, 32, 4.0, 2

    key = jax.random.PRNGKey(0)
    affine = jax.random.normal(key, (batch, 4), dtype=jnp.float32)

    # affine branch
    out_aff = jax.block_until_ready(
        fourier_feature(batch, size, dim, cutoff, affine=affine,
                        affine_norm=True))
    ref_aff = fourier_feature_ref(batch, size, dim, cutoff, affine=affine,
                                  affine_norm=True)

    # no-affine branch (single kernel launch + broadcast)
    out_plain = jax.block_until_ready(
        fourier_feature(batch, size, dim, cutoff, affine=None))
    ref_plain = fourier_feature_ref(batch, size, dim, cutoff, affine=None)

    assert out_aff.shape == (batch, dim, size, size)
    assert out_plain.shape == (batch, dim, size, size)
    assert jnp.allclose(out_aff, ref_aff, atol=1e-4, rtol=1e-4)
    assert jnp.allclose(out_plain, ref_plain, atol=1e-4, rtol=1e-4)

    print("KERNEL_OK")
</pallas_src>

<mosaic_0001>
module attributes {stable_mosaic.version = 11 : i64} {
  func.func @_fourier_kernel(%arg0: i32, %arg1: i32, %arg2: memref<2x4xf32, #tpu.memory_space<smem>>, %arg3: memref<8x16xf32, #tpu.memory_space<vmem>>, %arg4: memref<8x16xf32, #tpu.memory_space<vmem>>, %arg5: memref<16x256xf32, #tpu.memory_space<vmem>>, %arg6: memref<16x256xf32, #tpu.memory_space<vmem>>, %arg7: memref<1x4x8x256xf32, #tpu.memory_space<vmem>>) attributes {dimension_semantics = [#tpu.dimension_semantics<parallel>, #tpu.dimension_semantics<parallel>], iteration_bounds = array<i64: 2, 1>, scalar_prefetch = 0 : i64, scratch_operands = 0 : i64, tpu.core_type = #tpu.core_type<tc>, window_params = [{transform_indices = @transform_0, window_bounds = array<i64: 2, 4>}, {transform_indices = @transform_1, window_bounds = array<i64: 8, 16>}, {transform_indices = @transform_2, window_bounds = array<i64: 8, 16>}, {pipeline_mode = #tpu.pipeline_mode<synchronous>, transform_indices = @transform_3, window_bounds = array<i64: 16, 256>}, {pipeline_mode = #tpu.pipeline_mode<synchronous>, transform_indices = @transform_4, window_bounds = array<i64: 16, 256>}, {transform_indices = @transform_5, window_bounds = array<i64: 1, 4, 8, 256>}]} {
    %0 = arith.index_cast %arg0 : i32 to index
    %c0 = arith.constant 0 : index
    %1 = memref.load %arg2[%0, %c0] : memref<2x4xf32, #tpu.memory_space<smem>>
    %2 = arith.index_cast %arg0 : i32 to index
    %c1 = arith.constant 1 : index
    %3 = memref.load %arg2[%2, %c1] : memref<2x4xf32, #tpu.memory_space<smem>>
    %4 = arith.index_cast %arg0 : i32 to index
    %c2 = arith.constant 2 : index
    %5 = memref.load %arg2[%4, %c2] : memref<2x4xf32, #tpu.memory_space<smem>>
    %6 = arith.index_cast %arg0 : i32 to index
    %c3 = arith.constant 3 : index
    %7 = memref.load %arg2[%6, %c3] : memref<2x4xf32, #tpu.memory_space<smem>>
    %8 = arith.mulf %1, %1 : f32
    %9 = arith.mulf %3, %3 : f32
    %10 = arith.addf %8, %9 : f32
    %11 = math.sqrt %10 : f32
    %cst = arith.constant 9.99999993E-9 : f32
    %12 = arith.addf %11, %cst : f32
    %cst_0 = arith.constant 1.000000e+00 : f32
    %13 = arith.divf %cst_0, %12 : f32
    %14 = arith.mulf %1, %13 : f32
    %15 = arith.mulf %3, %13 : f32
    %16 = arith.mulf %5, %13 : f32
    %17 = arith.mulf %7, %13 : f32
    %c0_1 = arith.constant 0 : index
    %c0_2 = arith.constant 0 : index
    %18 = vector.load %arg3[%c0_1, %c0_2] : memref<8x16xf32, #tpu.memory_space<vmem>>, vector<8x16xf32>
    %c0_3 = arith.constant 0 : index
    %c0_4 = arith.constant 0 : index
    %19 = vector.load %arg4[%c0_3, %c0_4] : memref<8x16xf32, #tpu.memory_space<vmem>>, vector<8x16xf32>
    %20 = vector.broadcast %14 : f32 to vector<8x16xf32>
    %21 = arith.mulf %18, %20 : vector<8x16xf32>
    %22 = vector.broadcast %15 : f32 to vector<8x16xf32>
    %23 = arith.mulf %18, %22 : vector<8x16xf32>
    %cst_5 = arith.constant 0.000000e+00 : f32
    %24 = vector.broadcast %cst_5 : f32 to vector<8x16xf32>
    %25 = arith.subf %24, %23 : vector<8x16xf32>
    %26 = vector.broadcast %17 : f32 to vector<8x16xf32>
    %27 = arith.mulf %26, %19 : vector<8x16xf32>
    %28 = arith.subf %25, %27 : vector<8x16xf32>
    %29 = vector.broadcast %16 : f32 to vector<8x16xf32>
    %30 = arith.mulf %29, %19 : vector<8x16xf32>
    %31 = arith.subf %21, %30 : vector<8x16xf32>
    %32 = tpu.concatenate %28, %31 in 0 : vector<8x16xf32>, vector<8x16xf32> -> vector<16x16xf32>
    %33 = tpu.concatenate %21, %23 in 0 : vector<8x16xf32>, vector<8x16xf32> -> vector<16x16xf32>
    %34 = math.sin %32 : vector<16x16xf32>
    %35 = math.cos %32 : vector<16x16xf32>
    %36 = math.sin %33 : vector<16x16xf32>
    %37 = math.cos %33 : vector<16x16xf32>
    %c0_6 = arith.constant 0 : index
    %c0_7 = arith.constant 0 : index
    %38 = vector.load %arg5[%c0_6, %c0_7] : memref<16x256xf32, #tpu.memory_space<vmem>>, vector<16x256xf32>
    %c0_8 = arith.constant 0 : index
    %c0_9 = arith.constant 0 : index
    %39 = vector.load %arg6[%c0_8, %c0_9] : memref<16x256xf32, #tpu.memory_space<vmem>>, vector<16x256xf32>
    %cst_10 = arith.constant dense<0.000000e+00> : vector<16x256xf32>
    %40 = tpu.matmul %34, %38, %cst_10 {dimension_numbers = #tpu.dot_dimension_numbers<[1], [0], [0], [1], [0, 0, 1, 1], [], []>} : vector<16x16xf32>, vector<16x256xf32>, vector<16x256xf32> -> vector<16x256xf32>
    %cst_11 = arith.constant dense<0.000000e+00> : vector<16x256xf32>
    %41 = tpu.matmul %35, %38, %cst_11 {dimension_numbers = #tpu.dot_dimension_numbers<[1], [0], [0], [1], [0, 0, 1, 1], [], []>} : vector<16x16xf32>, vector<16x256xf32>, vector<16x256xf32> -> vector<16x256xf32>
    %cst_12 = arith.constant dense<0.000000e+00> : vector<16x256xf32>
    %42 = tpu.matmul %36, %39, %cst_12 {dimension_numbers = #tpu.dot_dimension_numbers<[1], [0], [0], [1], [0, 0, 1, 1], [], []>} : vector<16x16xf32>, vector<16x256xf32>, vector<16x256xf32> -> vector<16x256xf32>
    %cst_13 = arith.constant dense<0.000000e+00> : vector<16x256xf32>
    %43 = tpu.matmul %37, %39, %cst_13 {dimension_numbers = #tpu.dot_dimension_numbers<[1], [0], [0], [1], [0, 0, 1, 1], [], []>} : vector<16x16xf32>, vector<16x256xf32>, vector<16x256xf32> -> vector<16x256xf32>
    %44 = arith.mulf %40, %43 : vector<16x256xf32>
    %45 = arith.mulf %41, %42 : vector<16x256xf32>
    %46 = arith.addf %44, %45 : vector<16x256xf32>
    %47 = arith.mulf %41, %43 : vector<16x256xf32>
    %48 = arith.mulf %40, %42 : vector<16x256xf32>
    %49 = arith.subf %47, %48 : vector<16x256xf32>
    %50 = vector.extract_strided_slice %46 {offsets = [0, 0], sizes = [8, 256], strides = [1, 1]} : vector<16x256xf32> to vector<8x256xf32>
    %c0_14 = arith.constant 0 : index
    %c0_15 = arith.constant 0 : index
    %c0_16 = arith.constant 0 : index
    %c0_17 = arith.constant 0 : index
    %51 = vector.load %arg7[%c0_14, %c0_15, %c0_16, %c0_17] : memref<1x4x8x256xf32, #tpu.memory_space<vmem>>, vector<1x1x8x256xf32>
    %52 = vector.shape_cast %51 : vector<1x1x8x256xf32> to vector<8x256xf32>
    %53 = vector.shape_cast %50 : vector<8x256xf32> to vector<1x1x8x256xf32>
    tpu.vector_store %arg7[%c0_14, %c0_15, %c0_16, %c0_17], %53 {strides = array<i32>} : memref<1x4x8x256xf32, #tpu.memory_space<vmem>>, vector<1x1x8x256xf32>,
    %54 = vector.extract_strided_slice %49 {offsets = [0, 0], sizes = [8, 256], strides = [1, 1]} : vector<16x256xf32> to vector<8x256xf32>
    %c0_18 = arith.constant 0 : index
    %c1_19 = arith.constant 1 : index
    %c0_20 = arith.constant 0 : index
    %c0_21 = arith.constant 0 : index
    %55 = vector.load %arg7[%c0_18, %c1_19, %c0_20, %c0_21] : memref<1x4x8x256xf32, #tpu.memory_space<vmem>>, vector<1x1x8x256xf32>
    %56 = vector.shape_cast %55 : vector<1x1x8x256xf32> to vector<8x256xf32>
    %57 = vector.shape_cast %54 : vector<8x256xf32> to vector<1x1x8x256xf32>
    tpu.vector_store %arg7[%c0_18, %c1_19, %c0_20, %c0_21], %57 {strides = array<i32>} : memref<1x4x8x256xf32, #tpu.memory_space<vmem>>, vector<1x1x8x256xf32>,
    %58 = vector.extract_strided_slice %46 {offsets = [8, 0], sizes = [8, 256], strides = [1, 1]} : vector<16x256xf32> to vector<8x256xf32>
    %c0_22 = arith.constant 0 : index
    %c2_23 = arith.constant 2 : index
    %c0_24 = arith.constant 0 : index
    %c0_25 = arith.constant 0 : index
    %59 = vector.load %arg7[%c0_22, %c2_23, %c0_24, %c0_25] : memref<1x4x8x256xf32, #tpu.memory_space<vmem>>, vector<1x1x8x256xf32>
    %60 = vector.shape_cast %59 : vector<1x1x8x256xf32> to vector<8x256xf32>
    %61 = vector.shape_cast %58 : vector<8x256xf32> to vector<1x1x8x256xf32>
    tpu.vector_store %arg7[%c0_22, %c2_23, %c0_24, %c0_25], %61 {strides = array<i32>} : memref<1x4x8x256xf32, #tpu.memory_space<vmem>>, vector<1x1x8x256xf32>,
    %62 = vector.extract_strided_slice %49 {offsets = [8, 0], sizes = [8, 256], strides = [1, 1]} : vector<16x256xf32> to vector<8x256xf32>
    %c0_26 = arith.constant 0 : index
    %c3_27 = arith.constant 3 : index
    %c0_28 = arith.constant 0 : index
    %c0_29 = arith.constant 0 : index
    %63 = vector.load %arg7[%c0_26, %c3_27, %c0_28, %c0_29] : memref<1x4x8x256xf32, #tpu.memory_space<vmem>>, vector<1x1x8x256xf32>
    %64 = vector.shape_cast %63 : vector<1x1x8x256xf32> to vector<8x256xf32>
    %65 = vector.shape_cast %62 : vector<8x256xf32> to vector<1x1x8x256xf32>
    tpu.vector_store %arg7[%c0_26, %c3_27, %c0_28, %c0_29], %65 {strides = array<i32>} : memref<1x4x8x256xf32, #tpu.memory_space<vmem>>, vector<1x1x8x256xf32>,
    return
  }
  func.func @transform_0(%arg0: i32, %arg1: i32) -> (i32, i32) {
    %c0_i32 = arith.constant 0 : i32
    %c0_i32_0 = arith.constant 0 : i32
    %c0_i32_1 = arith.constant 0 : i32
    return %c0_i32, %c0_i32_0 : i32, i32
  }
  func.func @transform_1(%arg0: i32, %arg1: i32) -> (i32, i32) {
    %c0_i32 = arith.constant 0 : i32
    %c0_i32_0 = arith.constant 0 : i32
    return %arg1, %c0_i32 : i32, i32
  }
  func.func @transform_2(%arg0: i32, %arg1: i32) -> (i32, i32) {
    %c0_i32 = arith.constant 0 : i32
    %c0_i32_0 = arith.constant 0 : i32
    return %arg1, %c0_i32 : i32, i32
  }
  func.func @transform_3(%arg0: i32, %arg1: i32) -> (i32, i32) {
    %c0_i32 = arith.constant 0 : i32
    %c0_i32_0 = arith.constant 0 : i32
    %c0_i32_1 = arith.constant 0 : i32
    return %c0_i32, %c0_i32_0 : i32, i32
  }
  func.func @transform_4(%arg0: i32, %arg1: i32) -> (i32, i32) {
    %c0_i32 = arith.constant 0 : i32
    %c0_i32_0 = arith.constant 0 : i32
    %c0_i32_1 = arith.constant 0 : i32
    return %c0_i32, %c0_i32_0 : i32, i32
  }
  func.func @transform_5(%arg0: i32, %arg1: i32) -> (i32, i32, i32, i32) {
    %c0_i32 = arith.constant 0 : i32
    %c0_i32_0 = arith.constant 0 : i32
    %c0_i32_1 = arith.constant 0 : i32
    return %arg0, %c0_i32, %arg1, %c0_i32_0 : i32, i32, i32, i32
  }
}

</mosaic_0001>

<llo_original>
// kernel: tpu_custom_call.1
$region0: #{tpu_custom_call.1}
  #allocation0 [shape = 'u32[]', space=smem, size = 0x4, offset = 0x4, fixed_abs, tag = 'smem constant byte address 0x4 - core index']
  #allocation1 [shape = 'u32[72,128]{1,0:T(1,128)}', space=vmem, size = 0x9000, scoped, tag = 'internal scratch']
  %s0 = inlined_call_operand.hbm [shape: f32[2,4], index: 0, kind: input, shape index: {}]
  %s1 = inlined_call_operand.hbm [shape: f32[8,16], index: 1, kind: input, shape index: {}]
  %s2 = inlined_call_operand.hbm [shape: f32[8,16], index: 2, kind: input, shape index: {}]
  %s3 = inlined_call_operand.hbm [shape: f32[16,256], index: 3, kind: input, shape index: {}]
  %s4 = inlined_call_operand.hbm [shape: f32[16,256], index: 4, kind: input, shape index: {}]
  %s5 = inlined_call_operand.hbm [shape: f32[2,4,8,256], index: 5, kind: output, shape index: {}]
  %s6 = sld [smem:[#allocation0]]
  $region73: #{tpu_custom_call.1} parent=0
    _
  %s8 = ssub.s32 1, %s6
  %s9 = scalar_select 0, %s8, %s6
  $region1: #{tpu_custom_call.1} parent=0
    #allocation2 [shape = 'u8[1024]{0}', space=smem, size = 0x400, scoped, tag = 'input window, operand 0, single buffered']
    #allocation3 [shape = 's32[2]{0}', space=sflag, size = 0x8, scoped, tag = 'scoped memory for tpu_custom_call.1']
    #allocation4 [shape = 's32[2]{0}', space=sflag, size = 0x8, scoped, tag = 'scoped memory for tpu_custom_call.1']
    #allocation5 [shape = 's32[2]{0}', space=sflag, size = 0x8, scoped, tag = 'scoped memory for tpu_custom_call.1']
    #allocation6 [shape = 'u8[4096]{0}', space=vmem, size = 0x1000, scoped, tag = 'input window, operand 1, single buffered']
    #allocation7 [shape = 'u8[4096]{0}', space=vmem, size = 0x1000, scoped, tag = 'input window, operand 2, single buffered']
    #allocation8 [shape = 's32[1]{0}', space=sflag, size = 0x4, scoped, tag = 'scoped memory for tpu_custom_call.1']
    #allocation9 [shape = 'u8[16384]{0}', space=vmem, size = 0x4000, scoped, tag = 'input window, operand 3, single buffered']
    #allocation10 [shape = 'u8[16384]{0}', space=vmem, size = 0x4000, scoped, tag = 'input window, operand 4, single buffered']
    #allocation11 [shape = 's32[1]{0}', space=sflag, size = 0x4, scoped, tag = 'scoped memory for tpu_custom_call.1']
    #allocation12 [shape = 'u8[65536]{0}', space=vmem, size = 0x10000, scoped, tag = 'output window, operand 0']
    %10 = vsyncpa [#allocation5], 0
    %11 = vsyncpa [#allocation3], 0
    %12 = vsyncpa [#allocation8], 0
    %13 = vsyncpa [#allocation11], 0
    %14 = vsyncpa [#allocation4], 0
    %s15 = scalar_lea.sflag [#allocation4], 1
    %16 = vsyncpa %s15, 0
    loop: start=0, step=1, limit=4
    $region2: #{tpu_custom_call.1} parent=1 // loop_pre_header
      _
    $region3: #{tpu_custom_call.1} parent=1 // loop_header
      %s18 = sphi 0, %s22
      %p19 = scmp.ge.s32.totalorder %s18, 4
      %s25 = sphi 0, %s37
      %s26 = sphi 0, %s33
      %s27 = sphi 0, %s25
      %s28 = sphi 0, %s26
      %s29 = sphi 0, %s27
      %s30 = sphi 0, %s28
      %s38 = sphi 0, %s38
      %s40 = sphi 0, %s38
      %s41 = sphi 0, %s40
      %s55 = sphi 0, %s41
      %s61 = sphi 0, %s63
      %s64 = sphi 0, %s61
      %s65 = sphi 0, %s64
      %s81 = sphi 0, %s65
      %s87 = sphi 0, %s89
      %s90 = sphi 0, %s87
      %s91 = sphi 0, %s90
      %s107 = sphi 0, %s91
      %s111 = sphi 0, %s111
      %s113 = sphi 0, %s111
      %s114 = sphi 0, %s113
      %s128 = sphi 0, %s114
      %s132 = sphi 0, %s132
      %s134 = sphi 0, %s132
      %s135 = sphi 0, %s134
      %s149 = sphi 0, %s135
      %s157 = sphi 0, %s159
      %s160 = sphi 0, %s157
      %s161 = sphi 0, %s160
      %s177 = sphi 0, %s161
    $region4: #{tpu_custom_call.1} parent=1 // loop_header_branch
      %21 = sbr.rel (%p19) target = $region8
    $region5: #{tpu_custom_call.1} parent=1 // loop_body
      %s23 = ssub.s32 %s18, 1
      %s24 = ssub.s32 %s18, 2
      %s31 = sadd.s32 1, %s26
      %p32 = scmp.ge.s32.totalorder %s31, 1
      %s33 = scalar_select %p32, 0, %s31
      %s34 = sadd.s32 1, %s25
      %s35 = scalar_select %p32, %s34, %s25
      %p36 = scmp.ge.s32.totalorder %s35, 2
      %s37 = scalar_select %p36, 0, %s35
      %s39 = sadd.s32 %s38, 1
      %p42 = scmp.eq.s32.totalorder %s18, 1
      %p43 = scmp.ne.s32.totalorder %s38, %s40
      %p44 = scmp.eq.s32.totalorder %s18, 0
      %p45 = por %p43, %p44
      %p46 = scmp.ne.s32.totalorder %s38, %s40
      %p47 = scmp.eq.s32.totalorder %s23, 1
      %p48 = por %p46, %p47
      %p49 = scmp.ne.s32.totalorder %s40, %s41
      %p50 = scmp.eq.s32.totalorder %s23, 0
      %p51 = por %p49, %p50
      %p52 = scmp.ne.s32.totalorder %s40, %s41
      %p53 = scmp.eq.s32.totalorder %s24, 1
      %p54 = por %p52, %p53
      %p56 = scmp.ne.s32.totalorder %s41, %s55
      %p57 = scmp.eq.s32.totalorder %s24, 0
      %p58 = por %p56, %p57
      %s59 = ssub.s32 %s26, %s33
      %p60 = scmp.eq.s32.totalorder %s59, 0
      %s62 = sadd.s32 %s61, 1
      %s63 = scalar_select %p60, %s61, %s62
      %p66 = pneg %p60
      %p67 = scmp.eq.s32.totalorder %s18, 1
      %p68 = por %p66, %p67
      %p69 = scmp.ne.s32.totalorder %s61, %s64
      %p70 = scmp.eq.s32.totalorder %s18, 0
      %p71 = por %p69, %p70
      %p72 = scmp.ne.s32.totalorder %s61, %s64
      %p73 = scmp.eq.s32.totalorder %s23, 1
      %p74 = por %p72, %p73
      %p75 = scmp.ne.s32.totalorder %s64, %s65
      %p76 = scmp.eq.s32.totalorder %s23, 0
      %p77 = por %p75, %p76
      %p78 = scmp.ne.s32.totalorder %s64, %s65
      %p79 = scmp.eq.s32.totalorder %s24, 1
      %p80 = por %p78, %p79
      %p82 = scmp.ne.s32.totalorder %s65, %s81
      %p83 = scmp.eq.s32.totalorder %s24, 0
      %p84 = por %p82, %p83
      %s85 = ssub.s32 %s26, %s33
      %p86 = scmp.eq.s32.totalorder %s85, 0
      %s88 = sadd.s32 %s87, 1
      %s89 = scalar_select %p86, %s87, %s88
      %p92 = pneg %p86
      %p93 = scmp.eq.s32.totalorder %s18, 1
      %p94 = por %p92, %p93
      %p95 = scmp.ne.s32.totalorder %s87, %s90
      %p96 = scmp.eq.s32.totalorder %s18, 0
      %p97 = por %p95, %p96
      %p98 = scmp.ne.s32.totalorder %s87, %s90
      %p99 = scmp.eq.s32.totalorder %s23, 1
      %p100 = por %p98, %p99
      %p101 = scmp.ne.s32.totalorder %s90, %s91
      %p102 = scmp.eq.s32.totalorder %s23, 0
      %p103 = por %p101, %p102
      %p104 = scmp.ne.s32.totalorder %s90, %s91
      %p105 = scmp.eq.s32.totalorder %s24, 1
      %p106 = por %p104, %p105
      %p108 = scmp.ne.s32.totalorder %s91, %s107
      %p109 = scmp.eq.s32.totalorder %s24, 0
      %p110 = por %p108, %p109
      %s112 = sadd.s32 %s111, 1
      %p115 = scmp.eq.s32.totalorder %s18, 1
      %p116 = scmp.ne.s32.totalorder %s111, %s113
      %p117 = scmp.eq.s32.totalorder %s18, 0
      %p118 = por %p116, %p117
      %p119 = scmp.ne.s32.totalorder %s111, %s113
      %p120 = scmp.eq.s32.totalorder %s23, 1
      %p121 = por %p119, %p120
      %p122 = scmp.ne.s32.totalorder %s113, %s114
      %p123 = scmp.eq.s32.totalorder %s23, 0
      %p124 = por %p122, %p123
      %p125 = scmp.ne.s32.totalorder %s113, %s114
      %p126 = scmp.eq.s32.totalorder %s24, 1
      %p127 = por %p125, %p126
      %p129 = scmp.ne.s32.totalorder %s114, %s128
      %p130 = scmp.eq.s32.totalorder %s24, 0
      %p131 = por %p129, %p130
      %s133 = sadd.s32 %s132, 1
      %p136 = scmp.eq.s32.totalorder %s18, 1
      %p137 = scmp.ne.s32.totalorder %s132, %s134
      %p138 = scmp.eq.s32.totalorder %s18, 0
      %p139 = por %p137, %p138
      %p140 = scmp.ne.s32.totalorder %s132, %s134
      %p141 = scmp.eq.s32.totalorder %s23, 1
      %p142 = por %p140, %p141
      %p143 = scmp.ne.s32.totalorder %s134, %s135
      %p144 = scmp.eq.s32.totalorder %s23, 0
      %p145 = por %p143, %p144
      %p146 = scmp.ne.s32.totalorder %s134, %s135
      %p147 = scmp.eq.s32.totalorder %s24, 1
      %p148 = por %p146, %p147
      %p150 = scmp.ne.s32.totalorder %s135, %s149
      %p151 = scmp.eq.s32.totalorder %s24, 0
      %p152 = por %p150, %p151
      %s153 = ssub.s32 %s25, %s37
      %s154 = ssub.s32 %s26, %s33
      %s155 = sor.u32 %s153, %s154
      %p156 = scmp.eq.s32.totalorder %s155, 0
      %s158 = sadd.s32 %s157, 1
      %s159 = scalar_select %p156, %s157, %s158
      %p162 = pneg %p156
      %p163 = scmp.eq.s32.totalorder %s18, 1
      %p164 = por %p162, %p163
      %p165 = scmp.ne.s32.totalorder %s157, %s160
      %p166 = scmp.eq.s32.totalorder %s18, 0
      %p167 = por %p165, %p166
      %p168 = scmp.ne.s32.totalorder %s157, %s160
      %p169 = scmp.eq.s32.totalorder %s23, 1
      %p170 = por %p168, %p169
      %p171 = scmp.ne.s32.totalorder %s160, %s161
      %p172 = scmp.eq.s32.totalorder %s23, 0
      %p173 = por %p171, %p172
      %p174 = scmp.ne.s32.totalorder %s160, %s161
      %p175 = scmp.eq.s32.totalorder %s24, 1
      %p176 = por %p174, %p175
      %p178 = scmp.ne.s32.totalorder %s161, %s177
      %p179 = scmp.eq.s32.totalorder %s24, 0
      %p180 = por %p178, %p179
      %p181 = scmp.le.s32.totalorder 1, %s18
      %p182 = scmp.lt.s32.totalorder %s18, 3
      %p183 = pnand %p181, %p182
      %p184 = pneg %p183
      // Predicated region
      $region9: #{tpu_custom_call.1} parent=5 // pred_check
        _
      $region10: #{tpu_custom_call.1} parent=5 // pred_check_branch
        %186 = sbr.rel (%p183) target = $region12
      $region11: #{tpu_custom_call.1} parent=5 // pred_region
        %s187 = ssub.s32 %s18, 1
        // Predicated region
        $region13: #{tpu_custom_call.1} parent=11 // pred_check
          %p188 = pneg %p51
        $region14: #{tpu_custom_call.1} parent=11 // pred_check_branch
          %190 = sbr.rel (%p188) target = $region16
        $region15: #{tpu_custom_call.1} parent=11 // pred_region
          %192 = vsyncadd [#allocation5], 0
          %s194 = sshll.u32 %s0, 4
          %s195 = int_to_ptr.hbm [resolvable:$true] %s194
          %197 = dma.hbm_to_smem %s195, 32, [#allocation2], [#allocation5]
        $region16: #{tpu_custom_call.1} parent=11 // pred_fallthru
          _
        // Predicated region
        $region17: #{tpu_custom_call.1} parent=11 // pred_check
          %p198 = pneg %p77
        $region18: #{tpu_custom_call.1} parent=11 // pred_check_branch
          %200 = sbr.rel (%p198) target = $region20
        $region19: #{tpu_custom_call.1} parent=11 // pred_region
          %202 = vsyncadd [#allocation3], 0
          %s203 = smul.addr %s28, 8
          %s204 = scalar_lea.hbm %s1, %s203
          %s206 = sshll.u32 %s204, 4
          %s207 = int_to_ptr.hbm [resolvable:$true] %s206
          %s208 = sshll.u32 [#allocation6], 4
          %s209 = int_to_ptr.vmem [resolvable:$true] %s208
          %211 = dma.hbm_to_vmem [thread:$0]  %s207, 128, %s209, [#allocation3]
        $region20: #{tpu_custom_call.1} parent=11 // pred_fallthru
          _
        // Predicated region
        $region21: #{tpu_custom_call.1} parent=11 // pred_check
          %p212 = pneg %p103
        $region22: #{tpu_custom_call.1} parent=11 // pred_check_branch
          %214 = sbr.rel (%p212) target = $region24
        $region23: #{tpu_custom_call.1} parent=11 // pred_region
          %216 = vsyncadd [#allocation8], 0
          %s217 = smul.addr %s28, 8
          %s218 = scalar_lea.hbm %s2, %s217
          %s220 = sshll.u32 %s218, 4
          %s221 = int_to_ptr.hbm [resolvable:$true] %s220
          %s222 = sshll.u32 [#allocation7], 4
          %s223 = int_to_ptr.vmem [resolvable:$true] %s222
          %225 = dma.hbm_to_vmem [thread:$0]  %s221, 128, %s223, [#allocation8]
        $region24: #{tpu_custom_call.1} parent=11 // pred_fallthru
          _
        // Predicated region
        $region25: #{tpu_custom_call.1} parent=11 // pred_check
          %p226 = pneg %p124
        $region26: #{tpu_custom_call.1} parent=11 // pred_check_branch
          %228 = sbr.rel (%p226) target = $region28
        $region27: #{tpu_custom_call.1} parent=11 // pred_region
          %230 = vsyncadd [#allocation8], 0
          %s231 = sshll.u32 %s3, 4
          %s232 = int_to_ptr.hbm [resolvable:$true] %s231
          %s233 = sshll.u32 [#allocation9], 4
          %s234 = int_to_ptr.vmem [resolvable:$true] %s233
          %239 = dma.hbm_to_vmem [thread:$0]  %s232, 512, %s234, [#allocation8], 256, 256, 16
        $region28: #{tpu_custom_call.1} parent=11 // pred_fallthru
          _
        // Predicated region
        $region29: #{tpu_custom_call.1} parent=11 // pred_check
          %p240 = pneg %p145
        $region30: #{tpu_custom_call.1} parent=11 // pred_check_branch
          %242 = sbr.rel (%p240) target = $region32
        $region31: #{tpu_custom_call.1} parent=11 // pred_region
          %244 = vsyncadd [#allocation11], 0
          %s245 = sshll.u32 %s4, 4
          %s246 = int_to_ptr.hbm [resolvable:$true] %s245
          %s247 = sshll.u32 [#allocation10], 4
          %s248 = int_to_ptr.vmem [resolvable:$true] %s247
          %253 = dma.hbm_to_vmem [thread:$0]  %s246, 512, %s248, [#allocation11], 256, 256, 16
        $region32: #{tpu_custom_call.1} parent=11 // pred_fallthru
          _
      $region12: #{tpu_custom_call.1} parent=5 // pred_fallthru
        _
      %p254 = scmp.lt.s32.totalorder %s18, 2
      // Predicated region
      $region33: #{tpu_custom_call.1} parent=5 // pred_check
        %p255 = pneg %p254
      $region34: #{tpu_custom_call.1} parent=5 // pred_check_branch
        %257 = sbr.rel (%p255) target = $region36
      $region35: #{tpu_custom_call.1} parent=5 // pred_region
        _
      $region36: #{tpu_custom_call.1} parent=5 // pred_fallthru
        _
      %p258 = scmp.le.s32.totalorder 1, %s18
      %p259 = scmp.lt.s32.totalorder %s18, 3
      %p260 = pnand %p258, %p259
      %p261 = pneg %p260
      // Predicated region
      $region37: #{tpu_custom_call.1} parent=5 // pred_check
        _
      $region38: #{tpu_custom_call.1} parent=5 // pred_check_branch
        %263 = sbr.rel (%p260) target = $region40
      $region39: #{tpu_custom_call.1} parent=5 // pred_region
        %s264 = ssub.s32 %s18, 1
        // Predicated region
        $region41: #{tpu_custom_call.1} parent=39 // pred_check
          %p265 = pneg %p51
        $region42: #{tpu_custom_call.1} parent=39 // pred_check_branch
          %267 = sbr.rel (%p265) target = $region44
        $region43: #{tpu_custom_call.1} parent=39 // pred_region
          %269 = dma.done [#allocation5], 32
        $region44: #{tpu_custom_call.1} parent=39 // pred_fallthru
          _
        // Predicated region
        $region45: #{tpu_custom_call.1} parent=39 // pred_check
          %p270 = pneg %p77
        $region46: #{tpu_custom_call.1} parent=39 // pred_check_branch
          %272 = sbr.rel (%p270) target = $region48
        $region47: #{tpu_custom_call.1} parent=39 // pred_region
          %274 = dma.done [#allocation3], 128
        $region48: #{tpu_custom_call.1} parent=39 // pred_fallthru
          _
        // Predicated region
        $region49: #{tpu_custom_call.1} parent=39 // pred_check
          %p275 = pneg %p103
        $region50: #{tpu_custom_call.1} parent=39 // pred_check_branch
          %277 = sbr.rel (%p275) target = $region52
        $region51: #{tpu_custom_call.1} parent=39 // pred_region
          %279 = dma.done [#allocation8], 128
        $region52: #{tpu_custom_call.1} parent=39 // pred_fallthru
          _
        // Predicated region
        $region53: #{tpu_custom_call.1} parent=39 // pred_check
          %p280 = pneg %p124
        $region54: #{tpu_custom_call.1} parent=39 // pred_check_branch
          %282 = sbr.rel (%p280) target = $region56
        $region55: #{tpu_custom_call.1} parent=39 // pred_region
          %284 = dma.done [#allocation8], 512
        $region56: #{tpu_custom_call.1} parent=39 // pred_fallthru
          _
        // Predicated region
        $region57: #{tpu_custom_call.1} parent=39 // pred_check
          %p285 = pneg %p145
        $region58: #{tpu_custom_call.1} parent=39 // pred_check_branch
          %287 = sbr.rel (%p285) target = $region60
        $region59: #{tpu_custom_call.1} parent=39 // pred_region
          %289 = dma.done [#allocation11], 512
        $region60: #{tpu_custom_call.1} parent=39 // pred_fallthru
          _
        %290 = sfence
        %p291 = pneg %p51
        %p292 = pneg %p48
        %p293 = pneg %p77
        %p294 = pneg %p74
        %p295 = pneg %p103
        %p296 = pneg %p100
        %p297 = pneg %p124
        %p298 = pneg %p121
        %p299 = pneg %p145
        %p300 = pneg %p142
        %p301 = pneg %p173
        %p302 = pneg %p170
        %s303 = sand.u32 %s160, 1
        %s304 = scalar_lea.sflag [#allocation4], %s303
        %s305 = sand.u32 %s160, 1
        %s306 = smul.addr %s305, 64
        %s307 = scalar_lea.vmem [#allocation12], %s306
        %s308 = smul.u32 %s27, 128
        %s309 = sld [smem:[#allocation2 + %s308]]
        %s310 = sadd.s32 %s308, 1
        %s311 = sld [smem:[#allocation2 + %s310]]
        %s312 = sadd.s32 %s308, 2
        %s313 = sld [smem:[#allocation2 + %s312]]
        %s314 = sadd.s32 %s308, 3
        %s315 = sld [smem:[#allocation2 + %s314]]
        %s316 = smul.f32 %s309, %s309
        %s317 = smul.f32 %s311, %s311
        %s318 = sadd.f32 %s316, %s317
        %v319 = vstv %s318
        %v320 = vrsqrt.pop %v319
        %v321 = vmul.f32 %v320, %v319
        %v322 = vmul.f32 %v321, %v320
        %v323 = vmul.f32 0.5, %v322
        %v324 = vsub.f32 1.5, %v323
        %v325 = vmul.f32 %v320, %v324
        %v326 = vmul.f32 %v319, %v325
        %vm327 = vcmp.eq.f32.partialorder %v319, inf
        %v328 = vsel %vm327, %v319, %v326
        %vm329 = vcmp.eq.f32.partialorder %v319, 0.0
        %v330 = vand.u32 %v319, 2147483648
        %v331 = vsel %vm329, %v330, %v328
        %s332 = vtos %v331
        %s333 = sadd.f32 %s332, 1e-08
        %v334 = vstv %s333
        %v335 = vrcp.pop %v334
        %v336 = vmul.f32 %v334, %v335
        %v337 = vsub.f32 1.0, %v336
        %v338 = vmul.f32 %v335, %v337
        %v339 = vadd.f32 %v335, %v338
        %vm340 = vweird.f32 %v334
        %vm341 = vweird.f32 %v335
        %vm342 = vmor %vm340, %vm341
        %v343 = vsel %vm342, %v335, %v339
        %v344 = vand.u32 2147483647, %v334
        %vm345 = vcmp.eq.f32.partialorder %v344, 8.507059e+37
        %v346 = vand.u32 %v334, 2147483648
        %v347 = vor.u32 1.1754944e-38, %v346
        %v348 = vsel %vm345, %v347, %v343
        %s349 = vtos %v348
        %s350 = smul.f32 %s309, %s349
        %s351 = smul.f32 %s311, %s349
        %s352 = smul.f32 %s313, %s349
        %s353 = smul.f32 %s315, %s349
        %v354 = vld [vmem:[#allocation6] sm:$0xff]
        %v355 = vld [vmem:[#allocation7] sm:$0xff]
        %v356 = vstv %s350
        %v357 = vmul.f32 %v354, %v356
        %v358 = vstv %s351
        %v359 = vmul.f32 %v354, %v358
        %v360 = vsub.f32 0.0, %v359
        %v361 = vstv %s353
        %v362 = vmul.f32 %v361, %v355
        %v363 = vsub.f32 %v360, %v362
        %v364 = vstv %s352
        %v365 = vmul.f32 %v364, %v355
        %v366 = vsub.f32 %v357, %v365
        %v367 = vand.u32 2147483647, %v363
        %vm368 = vcmp.le.f32.partialorder %v367, 0.7853982
        %vm369 = vcmp.lt.s32.totalorder %v363, 0
        %v370 = vand.u32 %v363, 2139095040
        %v371 = vshrl.u32 %v370, 23
        %v372 = vsub.s32 %v371, 127
        %v373 = vand.u32 2147483647, %v363
        %v374 = vand.u32 %v373, 8388607
        %v375 = vor.u32 %v374, 8388608
        %v376 = vsub.s32 0, %v375
        %v377 = vadd.s32 %v372, 1
        %vm378 = vcmp.gt.s32.totalorder %v377, 0
        %v379 = vsel %vm378, %v377, 0
        %v380 = vshrl.u32 %v379, 5
        %v381 = vand.u32 %v379, 31
        %v382 = vsub.s32 32, %v381
        %v383 = vshrl.u32 683565275, %v382
        %v384 = vshll.u32 683565275, %v381
        %v385 = vshrl.u32 2475754826, %v382
        %v386 = vor.u32 %v384, %v385
        %v387 = vshll.u32 2475754826, %v381
        %v388 = vshrl.u32 2131351028, %v382
        %v389 = vor.u32 %v387, %v388
        %v390 = vshll.u32 2131351028, %v381
        %v391 = vshrl.u32 2102212464, %v382
        %v392 = vor.u32 %v390, %v391
        %v393 = vshll.u32 2102212464, %v381
        %v394 = vshrl.u32 920167782, %v382
        %v395 = vor.u32 %v393, %v394
        %v396 = vshll.u32 920167782, %v381
        %v397 = vshrl.u32 1326507024, %v382
        %v398 = vor.u32 %v396, %v397
        %vm399 = vcmp.lt.s32.totalorder %v380, 1
        %vm400 = vcmp.lt.s32.totalorder %v380, 2
        %vm401 = vcmp.lt.s32.totalorder %v380, 3
        %vm402 = vcmp.lt.s32.totalorder %v380, 4
        %v403 = vsel %vm399, %v383, %v386
        %v404 = vsel %vm402, %v392, 2102212464
        %v405 = vsel %vm401, %v389, %v404
        %v406 = vsel %vm400, %v403, %v405
        %v407 = vsel %vm399, %v386, %v389
        %v408 = vsel %vm402, %v395, 920167782
        %v409 = vsel %vm401, %v392, %v408
        %v410 = vsel %vm400, %v407, %v409
        %v411 = vsel %vm399, %v389, %v392
        %v412 = vsel %vm402, %v398, 1326507024
        %v413 = vsel %vm401, %v395, %v412
        %v414 = vsel %vm400, %v411, %v413
        %v415 = vshll.u32 %v375, 8
        %v416 = vand.u32 %v415, 65535
        %v417 = vshrl.u32 %v415, 16
        %v418 = vand.u32 %v414, 65535
        %v419 = vshrl.u32 %v414, 16
        %v420 = vmul.u32 %v416, %v418
        %v421 = vmul.u32 %v416, %v419
        %v422 = vmul.u32 %v417, %v418
        %v423 = vmul.u32 %v417, %v419
        %v424 = vshll.u32 %v421, 16
        %v425 = vshrl.u32 %v421, 16
        %v426 = vshll.u32 %v422, 16
        %v427 = vshrl.u32 %v422, 16
        %vm428 = vc.u32 %v420, %v424
        %v429 = vsel %vm428, 1, 0
        %v430 = vadd.s32 %v420, %v424
        %v431 = vadd.s32 %v423, %v429
        %vm432 = vc.u32 %v430, %v426
        %v433 = vsel %vm432, 1, 0
        %v434 = vadd.s32 %v430, %v426
        %v435 = vadd.s32 %v431, %v433
        %v436 = vadd.s32 %v435, %v425
        %v437 = vadd.s32 %v436, %v427
        %v438 = vand.u32 %v415, 65535
        %v439 = vshrl.u32 %v415, 16
        %v440 = vand.u32 %v410, 65535
        %v441 = vshrl.u32 %v410, 16
        %v442 = vmul.u32 %v438, %v440
        %v443 = vmul.u32 %v438, %v441
        %v444 = vmul.u32 %v439, %v440
        %v445 = vmul.u32 %v439, %v441
        %v446 = vshll.u32 %v443, 16
        %v447 = vshrl.u32 %v443, 16
        %v448 = vshll.u32 %v444, 16
        %v449 = vshrl.u32 %v444, 16
        %vm450 = vc.u32 %v442, %v446
        %v451 = vsel %vm450, 1, 0
        %v452 = vadd.s32 %v442, %v446
        %v453 = vadd.s32 %v445, %v451
        %vm454 = vc.u32 %v452, %v448
        %v455 = vsel %vm454, 1, 0
        %v456 = vadd.s32 %v452, %v448
        %v457 = vadd.s32 %v453, %v455
        %v458 = vadd.s32 %v457, %v447
        %v459 = vadd.s32 %v458, %v449
        %v460 = vmul.u32 %v415, %v406
        %v461 = vadd.s32 %v437, %v456
        %vm462 = vc.u32 %v437, %v456
        %v463 = vadd.s32 %v459, 1
        %v464 = vsel %vm462, %v463, %v459
        %v465 = vadd.s32 %v460, %v464
        %v466 = vadd.s32 %v465, 536870912
        %v467 = vshrl.u32 %v466, 30
        %v468 = vshll.u32 %v467, 30
        %v469 = vsub.s32 %v465, %v468
        %vm470 = vcmp.lt.s32.totalorder %v469, 0
        %v471 = vsub.s32 0, %v469
        %v472 = vsel %vm470, %v471, %v469
        %v473 = vclz %v472
        %v474 = vsub.s32 %v473, 2
        %vm475 = vcmp.gt.s32.totalorder 0, %v474
        %v476 = vsel %vm475, 0, %v474
        %v477 = vsub.s32 32, %v476
        %v478 = vshll.u32 %v469, %v476
        %v479 = vshrl.u32 %v461, %v477
        %v480 = vor.u32 %v478, %v479
        %v481 = vsub.s32 4294967266, %v476
        %v482 = vadd.s32 %v481, 127
        %v483 = vshll.u32 %v482, 23
        %v484 = vor.u32 4788187, %v483
        %v485 = vand.u32 2147483647, %v484
        %v487 = vcvt.s32.f32 %v480
        %v488 = vmul.f32 %v487, %v485
        %v489 = vxor.u32 %v488, 2147483648
        %v490 = vsel %vm369, %v489, %v488
        %v491 = vsub.s32 4, %v467
        %v492 = vsel %vm369, %v491, %v467
        %v493 = vsel %vm368, %v363, %v490
        %v494 = vsel %vm368, 0, %v492
        %v495 = vmul.f32 %v493, %v493
        %v496 = vmul.f32 %v495, -0.001358992
        %v497 = vadd.f32 %v496, 0.041655596
        %v498 = vmul.f32 %v495, %v497
        %v499 = vadd.f32 %v498, -0.4999988
        %v500 = vmul.f32 %v495, %v499
        %v501 = vadd.f32 1.0, %v500
        %v502 = vmul.f32 %v493, %v493
        %v503 = vmul.f32 %v502, -0.00019511016
        %v504 = vadd.f32 %v503, 0.008332121
        %v505 = vmul.f32 %v502, %v504
        %v506 = vadd.f32 %v505, -0.16666654
        %v507 = vmul.f32 %v502, %v506
        %v508 = vadd.f32 %v507, 1.0
        %v509 = vmul.f32 %v508, %v493
        %vm510 = vweird.f32 %v363
        %v511 = vadd.s32 %v494, 3
        %v512 = vand.u32 %v511, 3
        %vm513 = vcmp.lt.s32.totalorder %v512, 2
        %vm514 = vcmp.eq.s32.totalorder %v512, 0
        %v515 = vxor.u32 %v509, 2147483648
        %v516 = vsel %vm514, %v501, %v515
        %vm517 = vcmp.eq.s32.totalorder %v512, 2
        %v518 = vxor.u32 %v501, 2147483648
        %v519 = vsel %vm517, %v518, %v509
        %v520 = vsel %vm513, %v516, %v519
        %v521 = vsel %vm510, nan, %v520
        %v522 = vand.u32 2147483647, %v366
        %vm523 = vcmp.le.f32.partialorder %v522, 0.7853982
        %vm524 = vcmp.lt.s32.totalorder %v366, 0
        %v525 = vand.u32 %v366, 2139095040
        %v526 = vshrl.u32 %v525, 23
        %v527 = vsub.s32 %v526, 127
        %v528 = vand.u32 2147483647, %v366
        %v529 = vand.u32 %v528, 8388607
        %v530 = vor.u32 %v529, 8388608
        %v531 = vsub.s32 0, %v530
        %v532 = vadd.s32 %v527, 1
        %vm533 = vcmp.gt.s32.totalorder %v532, 0
        %v534 = vsel %vm533, %v532, 0
        %v535 = vshrl.u32 %v534, 5
        %v536 = vand.u32 %v534, 31
        %v537 = vsub.s32 32, %v536
        %v538 = vshrl.u32 683565275, %v537
        %v539 = vshll.u32 683565275, %v536
        %v540 = vshrl.u32 2475754826, %v537
        %v541 = vor.u32 %v539, %v540
        %v542 = vshll.u32 2475754826, %v536
        %v543 = vshrl.u32 2131351028, %v537
        %v544 = vor.u32 %v542, %v543
        %v545 = vshll.u32 2131351028, %v536
        %v546 = vshrl.u32 2102212464, %v537
        %v547 = vor.u32 %v545, %v546
        %v548 = vshll.u32 2102212464, %v536
        %v549 = vshrl.u32 920167782, %v537
        %v550 = vor.u32 %v548, %v549
        %v551 = vshll.u32 920167782, %v536
        %v552 = vshrl.u32 1326507024, %v537
        %v553 = vor.u32 %v551, %v552
        %vm554 = vcmp.lt.s32.totalorder %v535, 1
        %vm555 = vcmp.lt.s32.totalorder %v535, 2
        %vm556 = vcmp.lt.s32.totalorder %v535, 3
        %vm557 = vcmp.lt.s32.totalorder %v535, 4
        %v558 = vsel %vm554, %v538, %v541
        %v559 = vsel %vm557, %v547, 2102212464
        %v560 = vsel %vm556, %v544, %v559
        %v561 = vsel %vm555, %v558, %v560
        %v562 = vsel %vm554, %v541, %v544
        %v563 = vsel %vm557, %v550, 920167782
        %v564 = vsel %vm556, %v547, %v563
        %v565 = vsel %vm555, %v562, %v564
        %v566 = vsel %vm554, %v544, %v547
        %v567 = vsel %vm557, %v553, 1326507024
        %v568 = vsel %vm556, %v550, %v567
        %v569 = vsel %vm555, %v566, %v568
        %v570 = vshll.u32 %v530, 8
        %v571 = vand.u32 %v570, 65535
        %v572 = vshrl.u32 %v570, 16
        %v573 = vand.u32 %v569, 65535
        %v574 = vshrl.u32 %v569, 16
        %v575 = vmul.u32 %v571, %v573
        %v576 = vmul.u32 %v571, %v574
        %v577 = vmul.u32 %v572, %v573
        %v578 = vmul.u32 %v572, %v574
        %v579 = vshll.u32 %v576, 16
        %v580 = vshrl.u32 %v576, 16
        %v581 = vshll.u32 %v577, 16
        %v582 = vshrl.u32 %v577, 16
        %vm583 = vc.u32 %v575, %v579
        %v584 = vsel %vm583, 1, 0
        %v585 = vadd.s32 %v575, %v579
        %v586 = vadd.s32 %v578, %v584
        %vm587 = vc.u32 %v585, %v581
        %v588 = vsel %vm587, 1, 0
        %v589 = vadd.s32 %v585, %v581
        %v590 = vadd.s32 %v586, %v588
        %v591 = vadd.s32 %v590, %v580
        %v592 = vadd.s32 %v591, %v582
        %v593 = vand.u32 %v570, 65535
        %v594 = vshrl.u32 %v570, 16
        %v595 = vand.u32 %v565, 65535
        %v596 = vshrl.u32 %v565, 16
        %v597 = vmul.u32 %v593, %v595
        %v598 = vmul.u32 %v593, %v596
        %v599 = vmul.u32 %v594, %v595
        %v600 = vmul.u32 %v594, %v596
        %v601 = vshll.u32 %v598, 16
        %v602 = vshrl.u32 %v598, 16
        %v603 = vshll.u32 %v599, 16
        %v604 = vshrl.u32 %v599, 16
        %vm605 = vc.u32 %v597, %v601
        %v606 = vsel %vm605, 1, 0
        %v607 = vadd.s32 %v597, %v601
        %v608 = vadd.s32 %v600, %v606
        %vm609 = vc.u32 %v607, %v603
        %v610 = vsel %vm609, 1, 0
        %v611 = vadd.s32 %v607, %v603
        %v612 = vadd.s32 %v608, %v610
        %v613 = vadd.s32 %v612, %v602
        %v614 = vadd.s32 %v613, %v604
        %v615 = vmul.u32 %v570, %v561
        %v616 = vadd.s32 %v592, %v611
        %vm617 = vc.u32 %v592, %v611
        %v618 = vadd.s32 %v614, 1
        %v619 = vsel %vm617, %v618, %v614
        %v620 = vadd.s32 %v615, %v619
        %v621 = vadd.s32 %v620, 536870912
        %v622 = vshrl.u32 %v621, 30
        %v623 = vshll.u32 %v622, 30
        %v624 = vsub.s32 %v620, %v623
        %vm625 = vcmp.lt.s32.totalorder %v624, 0
        %v626 = vsub.s32 0, %v624
        %v627 = vsel %vm625, %v626, %v624
        %v628 = vclz %v627
        %v629 = vsub.s32 %v628, 2
        %vm630 = vcmp.gt.s32.totalorder 0, %v629
        %v631 = vsel %vm630, 0, %v629
        %v632 = vsub.s32 32, %v631
        %v633 = vshll.u32 %v624, %v631
        %v634 = vshrl.u32 %v616, %v632
        %v635 = vor.u32 %v633, %v634
        %v636 = vsub.s32 4294967266, %v631
        %v637 = vadd.s32 %v636, 127
        %v638 = vshll.u32 %v637, 23
        %v639 = vor.u32 4788187, %v638
        %v640 = vand.u32 2147483647, %v639
        %v642 = vcvt.s32.f32 %v635
        %v643 = vmul.f32 %v642, %v640
        %v644 = vxor.u32 %v643, 2147483648
        %v645 = vsel %vm524, %v644, %v643
        %v646 = vsub.s32 4, %v622
        %v647 = vsel %vm524, %v646, %v622
        %v648 = vsel %vm523, %v366, %v645
        %v649 = vsel %vm523, 0, %v647
        %v650 = vmul.f32 %v648, %v648
        %v651 = vmul.f32 %v650, -0.001358992
        %v652 = vadd.f32 %v651, 0.041655596
        %v653 = vmul.f32 %v650, %v652
        %v654 = vadd.f32 %v653, -0.4999988
        %v655 = vmul.f32 %v650, %v654
        %v656 = vadd.f32 1.0, %v655
        %v657 = vmul.f32 %v648, %v648
        %v658 = vmul.f32 %v657, -0.00019511016
        %v659 = vadd.f32 %v658, 0.008332121
        %v660 = vmul.f32 %v657, %v659
        %v661 = vadd.f32 %v660, -0.16666654
        %v662 = vmul.f32 %v657, %v661
        %v663 = vadd.f32 %v662, 1.0
        %v664 = vmul.f32 %v663, %v648
        %vm665 = vweird.f32 %v366
        %v666 = vadd.s32 %v649, 3
        %v667 = vand.u32 %v666, 3
        %vm668 = vcmp.lt.s32.totalorder %v667, 2
        %vm669 = vcmp.eq.s32.totalorder %v667, 0
        %v670 = vxor.u32 %v664, 2147483648
        %v671 = vsel %vm669, %v656, %v670
        %vm672 = vcmp.eq.s32.totalorder %v667, 2
        %v673 = vxor.u32 %v656, 2147483648
        %v674 = vsel %vm672, %v673, %v664
        %v675 = vsel %vm668, %v671, %v674
        %v676 = vsel %vm665, nan, %v675
        %v677 = vand.u32 2147483647, %v363
        %vm678 = vcmp.le.f32.partialorder %v677, 0.7853982
        %vm679 = vcmp.lt.s32.totalorder %v363, 0
        %v680 = vand.u32 %v363, 2139095040
        %v681 = vshrl.u32 %v680, 23
        %v682 = vsub.s32 %v681, 127
        %v683 = vand.u32 2147483647, %v363
        %v684 = vand.u32 %v683, 8388607
        %v685 = vor.u32 %v684, 8388608
        %v686 = vsub.s32 0, %v685
        %v687 = vadd.s32 %v682, 1
        %vm688 = vcmp.gt.s32.totalorder %v687, 0
        %v689 = vsel %vm688, %v687, 0
        %v690 = vshrl.u32 %v689, 5
        %v691 = vand.u32 %v689, 31
        %v692 = vsub.s32 32, %v691
        %v693 = vshrl.u32 683565275, %v692
        %v694 = vshll.u32 683565275, %v691
        %v695 = vshrl.u32 2475754826, %v692
        %v696 = vor.u32 %v694, %v695
        %v697 = vshll.u32 2475754826, %v691
        %v698 = vshrl.u32 2131351028, %v692
        %v699 = vor.u32 %v697, %v698
        %v700 = vshll.u32 2131351028, %v691
        %v701 = vshrl.u32 2102212464, %v692
        %v702 = vor.u32 %v700, %v701
        %v703 = vshll.u32 2102212464, %v691
        %v704 = vshrl.u32 920167782, %v692
        %v705 = vor.u32 %v703, %v704
        %v706 = vshll.u32 920167782, %v691
        %v707 = vshrl.u32 1326507024, %v692
        %v708 = vor.u32 %v706, %v707
        %vm709 = vcmp.lt.s32.totalorder %v690, 1
        %vm710 = vcmp.lt.s32.totalorder %v690, 2
        %vm711 = vcmp.lt.s32.totalorder %v690, 3
        %vm712 = vcmp.lt.s32.totalorder %v690, 4
        %v713 = vsel %vm709, %v693, %v696
        %v714 = vsel %vm712, %v702, 2102212464
        %v715 = vsel %vm711, %v699, %v714
        %v716 = vsel %vm710, %v713, %v715
        %v717 = vsel %vm709, %v696, %v699
        %v718 = vsel %vm712, %v705, 920167782
        %v719 = vsel %vm711, %v702, %v718
        %v720 = vsel %vm710, %v717, %v719
        %v721 = vsel %vm709, %v699, %v702
        %v722 = vsel %vm712, %v708, 1326507024
        %v723 = vsel %vm711, %v705, %v722
        %v724 = vsel %vm710, %v721, %v723
        %v725 = vshll.u32 %v685, 8
        %v726 = vand.u32 %v725, 65535
        %v727 = vshrl.u32 %v725, 16
        %v728 = vand.u32 %v724, 65535
        %v729 = vshrl.u32 %v724, 16
        %v730 = vmul.u32 %v726, %v728
        %v731 = vmul.u32 %v726, %v729
        %v732 = vmul.u32 %v727, %v728
        %v733 = vmul.u32 %v727, %v729
        %v734 = vshll.u32 %v731, 16
        %v735 = vshrl.u32 %v731, 16
        %v736 = vshll.u32 %v732, 16
        %v737 = vshrl.u32 %v732, 16
        %vm738 = vc.u32 %v730, %v734
        %v739 = vsel %vm738, 1, 0
        %v740 = vadd.s32 %v730, %v734
        %v741 = vadd.s32 %v733, %v739
        %vm742 = vc.u32 %v740, %v736
        %v743 = vsel %vm742, 1, 0
        %v744 = vadd.s32 %v740, %v736
        %v745 = vadd.s32 %v741, %v743
        %v746 = vadd.s32 %v745, %v735
        %v747 = vadd.s32 %v746, %v737
        %v748 = vand.u32 %v725, 65535
        %v749 = vshrl.u32 %v725, 16
        %v750 = vand.u32 %v720, 65535
        %v751 = vshrl.u32 %v720, 16
        %v752 = vmul.u32 %v748, %v750
        %v753 = vmul.u32 %v748, %v751
        %v754 = vmul.u32 %v749, %v750
        %v755 = vmul.u32 %v749, %v751
        %v756 = vshll.u32 %v753, 16
        %v757 = vshrl.u32 %v753, 16
        %v758 = vshll.u32 %v754, 16
        %v759 = vshrl.u32 %v754, 16
        %vm760 = vc.u32 %v752, %v756
        %v761 = vsel %vm760, 1, 0
        %v762 = vadd.s32 %v752, %v756
        %v763 = vadd.s32 %v755, %v761
        %vm764 = vc.u32 %v762, %v758
        %v765 = vsel %vm764, 1, 0
        %v766 = vadd.s32 %v762, %v758
        %v767 = vadd.s32 %v763, %v765
        %v768 = vadd.s32 %v767, %v757
        %v769 = vadd.s32 %v768, %v759
        %v770 = vmul.u32 %v725, %v716
        %v771 = vadd.s32 %v747, %v766
        %vm772 = vc.u32 %v747, %v766
        %v773 = vadd.s32 %v769, 1
        %v774 = vsel %vm772, %v773, %v769
        %v775 = vadd.s32 %v770, %v774
        %v776 = vadd.s32 %v775, 536870912
        %v777 = vshrl.u32 %v776, 30
        %v778 = vshll.u32 %v777, 30
        %v779 = vsub.s32 %v775, %v778
        %vm780 = vcmp.lt.s32.totalorder %v779, 0
        %v781 = vsub.s32 0, %v779
        %v782 = vsel %vm780, %v781, %v779
        %v783 = vclz %v782
        %v784 = vsub.s32 %v783, 2
        %vm785 = vcmp.gt.s32.totalorder 0, %v784
        %v786 = vsel %vm785, 0, %v784
        %v787 = vsub.s32 32, %v786
        %v788 = vshll.u32 %v779, %v786
        %v789 = vshrl.u32 %v771, %v787
        %v790 = vor.u32 %v788, %v789
        %v791 = vsub.s32 4294967266, %v786
        %v792 = vadd.s32 %v791, 127
        %v793 = vshll.u32 %v792, 23
        %v794 = vor.u32 4788187, %v793
        %v795 = vand.u32 2147483647, %v794
        %v797 = vcvt.s32.f32 %v790
        %v798 = vmul.f32 %v797, %v795
        %v799 = vxor.u32 %v798, 2147483648
        %v800 = vsel %vm679, %v799, %v798
        %v801 = vsub.s32 4, %v777
        %v802 = vsel %vm679, %v801, %v777
        %v803 = vsel %vm678, %v363, %v800
        %v804 = vsel %vm678, 0, %v802
        %v805 = vmul.f32 %v803, %v803
        %v806 = vmul.f32 %v805, -0.001358992
        %v807 = vadd.f32 %v806, 0.041655596
        %v808 = vmul.f32 %v805, %v807
        %v809 = vadd.f32 %v808, -0.4999988
        %v810 = vmul.f32 %v805, %v809
        %v811 = vadd.f32 1.0, %v810
        %v812 = vmul.f32 %v803, %v803
        %v813 = vmul.f32 %v812, -0.00019511016
        %v814 = vadd.f32 %v813, 0.008332121
        %v815 = vmul.f32 %v812, %v814
        %v816 = vadd.f32 %v815, -0.16666654
        %v817 = vmul.f32 %v812, %v816
        %v818 = vadd.f32 %v817, 1.0
        %v819 = vmul.f32 %v818, %v803
        %vm820 = vweird.f32 %v363
        %v821 = vand.u32 %v804, 3
        %vm822 = vcmp.lt.s32.totalorder %v821, 2
        %vm823 = vcmp.eq.s32.totalorder %v821, 0
        %v824 = vxor.u32 %v819, 2147483648
        %v825 = vsel %vm823, %v811, %v824
        %vm826 = vcmp.eq.s32.totalorder %v821, 2
        %v827 = vxor.u32 %v811, 2147483648
        %v828 = vsel %vm826, %v827, %v819
        %v829 = vsel %vm822, %v825, %v828
        %v830 = vsel %vm820, nan, %v829
        %v831 = vand.u32 2147483647, %v366
        %vm832 = vcmp.le.f32.partialorder %v831, 0.7853982
        %vm833 = vcmp.lt.s32.totalorder %v366, 0
        %v834 = vand.u32 %v366, 2139095040
        %v835 = vshrl.u32 %v834, 23
        %v836 = vsub.s32 %v835, 127
        %v837 = vand.u32 2147483647, %v366
        %v838 = vand.u32 %v837, 8388607
        %v839 = vor.u32 %v838, 8388608
        %v840 = vsub.s32 0, %v839
        %v841 = vadd.s32 %v836, 1
        %vm842 = vcmp.gt.s32.totalorder %v841, 0
        %v843 = vsel %vm842, %v841, 0
        %v844 = vshrl.u32 %v843, 5
        %v845 = vand.u32 %v843, 31
        %v846 = vsub.s32 32, %v845
        %v847 = vshrl.u32 683565275, %v846
        %v848 = vshll.u32 683565275, %v845
        %v849 = vshrl.u32 2475754826, %v846
        %v850 = vor.u32 %v848, %v849
        %v851 = vshll.u32 2475754826, %v845
        %v852 = vshrl.u32 2131351028, %v846
        %v853 = vor.u32 %v851, %v852
        %v854 = vshll.u32 2131351028, %v845
        %v855 = vshrl.u32 2102212464, %v846
        %v856 = vor.u32 %v854, %v855
        %v857 = vshll.u32 2102212464, %v845
        %v858 = vshrl.u32 920167782, %v846
        %v859 = vor.u32 %v857, %v858
        %v860 = vshll.u32 920167782, %v845
        %v861 = vshrl.u32 1326507024, %v846
        %v862 = vor.u32 %v860, %v861
        %vm863 = vcmp.lt.s32.totalorder %v844, 1
        %vm864 = vcmp.lt.s32.totalorder %v844, 2
        %vm865 = vcmp.lt.s32.totalorder %v844, 3
        %vm866 = vcmp.lt.s32.totalorder %v844, 4
        %v867 = vsel %vm863, %v847, %v850
        %v868 = vsel %vm866, %v856, 2102212464
        %v869 = vsel %vm865, %v853, %v868
        %v870 = vsel %vm864, %v867, %v869
        %v871 = vsel %vm863, %v850, %v853
        %v872 = vsel %vm866, %v859, 920167782
        %v873 = vsel %vm865, %v856, %v872
        %v874 = vsel %vm864, %v871, %v873
        %v875 = vsel %vm863, %v853, %v856
        %v876 = vsel %vm866, %v862, 1326507024
        %v877 = vsel %vm865, %v859, %v876
        %v878 = vsel %vm864, %v875, %v877
        %v879 = vshll.u32 %v839, 8
        %v880 = vand.u32 %v879, 65535
        %v881 = vshrl.u32 %v879, 16
        %v882 = vand.u32 %v878, 65535
        %v883 = vshrl.u32 %v878, 16
        %v884 = vmul.u32 %v880, %v882
        %v885 = vmul.u32 %v880, %v883
        %v886 = vmul.u32 %v881, %v882
        %v887 = vmul.u32 %v881, %v883
        %v888 = vshll.u32 %v885, 16
        %v889 = vshrl.u32 %v885, 16
        %v890 = vshll.u32 %v886, 16
        %v891 = vshrl.u32 %v886, 16
        %vm892 = vc.u32 %v884, %v888
        %v893 = vsel %vm892, 1, 0
        %v894 = vadd.s32 %v884, %v888
        %v895 = vadd.s32 %v887, %v893
        %vm896 = vc.u32 %v894, %v890
        %v897 = vsel %vm896, 1, 0
        %v898 = vadd.s32 %v894, %v890
        %v899 = vadd.s32 %v895, %v897
        %v900 = vadd.s32 %v899, %v889
        %v901 = vadd.s32 %v900, %v891
        %v902 = vand.u32 %v879, 65535
        %v903 = vshrl.u32 %v879, 16
        %v904 = vand.u32 %v874, 65535
        %v905 = vshrl.u32 %v874, 16
        %v906 = vmul.u32 %v902, %v904
        %v907 = vmul.u32 %v902, %v905
        %v908 = vmul.u32 %v903, %v904
        %v909 = vmul.u32 %v903, %v905
        %v910 = vshll.u32 %v907, 16
        %v911 = vshrl.u32 %v907, 16
        %v912 = vshll.u32 %v908, 16
        %v913 = vshrl.u32 %v908, 16
        %vm914 = vc.u32 %v906, %v910
        %v915 = vsel %vm914, 1, 0
        %v916 = vadd.s32 %v906, %v910
        %v917 = vadd.s32 %v909, %v915
        %vm918 = vc.u32 %v916, %v912
        %v919 = vsel %vm918, 1, 0
        %v920 = vadd.s32 %v916, %v912
        %v921 = vadd.s32 %v917, %v919
        %v922 = vadd.s32 %v921, %v911
        %v923 = vadd.s32 %v922, %v913
        %v924 = vmul.u32 %v879, %v870
        %v925 = vadd.s32 %v901, %v920
        %vm926 = vc.u32 %v901, %v920
        %v927 = vadd.s32 %v923, 1
        %v928 = vsel %vm926, %v927, %v923
        %v929 = vadd.s32 %v924, %v928
        %v930 = vadd.s32 %v929, 536870912
        %v931 = vshrl.u32 %v930, 30
        %v932 = vshll.u32 %v931, 30
        %v933 = vsub.s32 %v929, %v932
        %vm934 = vcmp.lt.s32.totalorder %v933, 0
        %v935 = vsub.s32 0, %v933
        %v936 = vsel %vm934, %v935, %v933
        %v937 = vclz %v936
        %v938 = vsub.s32 %v937, 2
        %vm939 = vcmp.gt.s32.totalorder 0, %v938
        %v940 = vsel %vm939, 0, %v938
        %v941 = vsub.s32 32, %v940
        %v942 = vshll.u32 %v933, %v940
        %v943 = vshrl.u32 %v925, %v941
        %v944 = vor.u32 %v942, %v943
        %v945 = vsub.s32 4294967266, %v940
        %v946 = vadd.s32 %v945, 127
        %v947 = vshll.u32 %v946, 23
        %v948 = vor.u32 4788187, %v947
        %v949 = vand.u32 2147483647, %v948
        %v951 = vcvt.s32.f32 %v944
        %v952 = vmul.f32 %v951, %v949
        %v953 = vxor.u32 %v952, 2147483648
        %v954 = vsel %vm833, %v953, %v952
        %v955 = vsub.s32 4, %v931
        %v956 = vsel %vm833, %v955, %v931
        %v957 = vsel %vm832, %v366, %v954
        %v958 = vsel %vm832, 0, %v956
        %v959 = vmul.f32 %v957, %v957
        %v960 = vmul.f32 %v959, -0.001358992
        %v961 = vadd.f32 %v960, 0.041655596
        %v962 = vmul.f32 %v959, %v961
        %v963 = vadd.f32 %v962, -0.4999988
        %v964 = vmul.f32 %v959, %v963
        %v965 = vadd.f32 1.0, %v964
        %v966 = vmul.f32 %v957, %v957
        %v967 = vmul.f32 %v966, -0.00019511016
        %v968 = vadd.f32 %v967, 0.008332121
        %v969 = vmul.f32 %v966, %v968
        %v970 = vadd.f32 %v969, -0.16666654
        %v971 = vmul.f32 %v966, %v970
        %v972 = vadd.f32 %v971, 1.0
        %v973 = vmul.f32 %v972, %v957
        %vm974 = vweird.f32 %v366
        %v975 = vand.u32 %v958, 3
        %vm976 = vcmp.lt.s32.totalorder %v975, 2
        %vm977 = vcmp.eq.s32.totalorder %v975, 0
        %v978 = vxor.u32 %v973, 2147483648
        %v979 = vsel %vm977, %v965, %v978
        %vm980 = vcmp.eq.s32.totalorder %v975, 2
        %v981 = vxor.u32 %v965, 2147483648
        %v982 = vsel %vm980, %v981, %v973
        %v983 = vsel %vm976, %v979, %v982
        %v984 = vsel %vm974, nan, %v983
        %v985 = vand.u32 2147483647, %v357
        %vm986 = vcmp.le.f32.partialorder %v985, 0.7853982
        %vm987 = vcmp.lt.s32.totalorder %v357, 0
        %v988 = vand.u32 %v357, 2139095040
        %v989 = vshrl.u32 %v988, 23
        %v990 = vsub.s32 %v989, 127
        %v991 = vand.u32 2147483647, %v357
        %v992 = vand.u32 %v991, 8388607
        %v993 = vor.u32 %v992, 8388608
        %v994 = vsub.s32 0, %v993
        %v995 = vadd.s32 %v990, 1
        %vm996 = vcmp.gt.s32.totalorder %v995, 0
        %v997 = vsel %vm996, %v995, 0
        %v998 = vshrl.u32 %v997, 5
        %v999 = vand.u32 %v997, 31
        %v1000 = vsub.s32 32, %v999
        %v1001 = vshrl.u32 683565275, %v1000
        %v1002 = vshll.u32 683565275, %v999
        %v1003 = vshrl.u32 2475754826, %v1000
        %v1004 = vor.u32 %v1002, %v1003
        %v1005 = vshll.u32 2475754826, %v999
        %v1006 = vshrl.u32 2131351028, %v1000
        %v1007 = vor.u32 %v1005, %v1006
        %v1008 = vshll.u32 2131351028, %v999
        %v1009 = vshrl.u32 2102212464, %v1000
        %v1010 = vor.u32 %v1008, %v1009
        %v1011 = vshll.u32 2102212464, %v999
        %v1012 = vshrl.u32 920167782, %v1000
        %v1013 = vor.u32 %v1011, %v1012
        %v1014 = vshll.u32 920167782, %v999
        %v1015 = vshrl.u32 1326507024, %v1000
        %v1016 = vor.u32 %v1014, %v1015
        %vm1017 = vcmp.lt.s32.totalorder %v998, 1
        %vm1018 = vcmp.lt.s32.totalorder %v998, 2
        %vm1019 = vcmp.lt.s32.totalorder %v998, 3
        %vm1020 = vcmp.lt.s32.totalorder %v998, 4
        %v1021 = vsel %vm1017, %v1001, %v1004
        %v1022 = vsel %vm1020, %v1010, 2102212464
        %v1023 = vsel %vm1019, %v1007, %v1022
        %v1024 = vsel %vm1018, %v1021, %v1023
        %v1025 = vsel %vm1017, %v1004, %v1007
        %v1026 = vsel %vm1020, %v1013, 920167782
        %v1027 = vsel %vm1019, %v1010, %v1026
        %v1028 = vsel %vm1018, %v1025, %v1027
        %v1029 = vsel %vm1017, %v1007, %v1010
        %v1030 = vsel %vm1020, %v1016, 1326507024
        %v1031 = vsel %vm1019, %v1013, %v1030
        %v1032 = vsel %vm1018, %v1029, %v1031
        %v1033 = vshll.u32 %v993, 8
        %v1034 = vand.u32 %v1033, 65535
        %v1035 = vshrl.u32 %v1033, 16
        %v1036 = vand.u32 %v1032, 65535
        %v1037 = vshrl.u32 %v1032, 16
        %v1038 = vmul.u32 %v1034, %v1036
        %v1039 = vmul.u32 %v1034, %v1037
        %v1040 = vmul.u32 %v1035, %v1036
        %v1041 = vmul.u32 %v1035, %v1037
        %v1042 = vshll.u32 %v1039, 16
        %v1043 = vshrl.u32 %v1039, 16
        %v1044 = vshll.u32 %v1040, 16
        %v1045 = vshrl.u32 %v1040, 16
        %vm1046 = vc.u32 %v1038, %v1042
        %v1047 = vsel %vm1046, 1, 0
        %v1048 = vadd.s32 %v1038, %v1042
        %v1049 = vadd.s32 %v1041, %v1047
        %vm1050 = vc.u32 %v1048, %v1044
        %v1051 = vsel %vm1050, 1, 0
        %v1052 = vadd.s32 %v1048, %v1044
        %v1053 = vadd.s32 %v1049, %v1051
        %v1054 = vadd.s32 %v1053, %v1043
        %v1055 = vadd.s32 %v1054, %v1045
        %v1056 = vand.u32 %v1033, 65535
        %v1057 = vshrl.u32 %v1033, 16
        %v1058 = vand.u32 %v1028, 65535
        %v1059 = vshrl.u32 %v1028, 16
        %v1060 = vmul.u32 %v1056, %v1058
        %v1061 = vmul.u32 %v1056, %v1059
        %v1062 = vmul.u32 %v1057, %v1058
        %v1063 = vmul.u32 %v1057, %v1059
        %v1064 = vshll.u32 %v1061, 16
        %v1065 = vshrl.u32 %v1061, 16
        %v1066 = vshll.u32 %v1062, 16
        %v1067 = vshrl.u32 %v1062, 16
        %vm1068 = vc.u32 %v1060, %v1064
        %v1069 = vsel %vm1068, 1, 0
        %v1070 = vadd.s32 %v1060, %v1064
        %v1071 = vadd.s32 %v1063, %v1069
        %vm1072 = vc.u32 %v1070, %v1066
        %v1073 = vsel %vm1072, 1, 0
        %v1074 = vadd.s32 %v1070, %v1066
        %v1075 = vadd.s32 %v1071, %v1073
        %v1076 = vadd.s32 %v1075, %v1065
        %v1077 = vadd.s32 %v1076, %v1067
        %v1078 = vmul.u32 %v1033, %v1024
        %v1079 = vadd.s32 %v1055, %v1074
        %vm1080 = vc.u32 %v1055, %v1074
        %v1081 = vadd.s32 %v1077, 1
        %v1082 = vsel %vm1080, %v1081, %v1077
        %v1083 = vadd.s32 %v1078, %v1082
        %v1084 = vadd.s32 %v1083, 536870912
        %v1085 = vshrl.u32 %v1084, 30
        %v1086 = vshll.u32 %v1085, 30
        %v1087 = vsub.s32 %v1083, %v1086
        %vm1088 = vcmp.lt.s32.totalorder %v1087, 0
        %v1089 = vsub.s32 0, %v1087
        %v1090 = vsel %vm1088, %v1089, %v1087
        %v1091 = vclz %v1090
        %v1092 = vsub.s32 %v1091, 2
        %vm1093 = vcmp.gt.s32.totalorder 0, %v1092
        %v1094 = vsel %vm1093, 0, %v1092
        %v1095 = vsub.s32 32, %v1094
        %v1096 = vshll.u32 %v1087, %v1094
        %v1097 = vshrl.u32 %v1079, %v1095
        %v1098 = vor.u32 %v1096, %v1097
        %v1099 = vsub.s32 4294967266, %v1094
        %v1100 = vadd.s32 %v1099, 127
        %v1101 = vshll.u32 %v1100, 23
        %v1102 = vor.u32 4788187, %v1101
        %v1103 = vand.u32 2147483647, %v1102
        %v1105 = vcvt.s32.f32 %v1098
        %v1106 = vmul.f32 %v1105, %v1103
        %v1107 = vxor.u32 %v1106, 2147483648
        %v1108 = vsel %vm987, %v1107, %v1106
        %v1109 = vsub.s32 4, %v1085
        %v1110 = vsel %vm987, %v1109, %v1085
        %v1111 = vsel %vm986, %v357, %v1108
        %v1112 = vsel %vm986, 0, %v1110
        %v1113 = vmul.f32 %v1111, %v1111
        %v1114 = vmul.f32 %v1113, -0.001358992
        %v1115 = vadd.f32 %v1114, 0.041655596
        %v1116 = vmul.f32 %v1113, %v1115
        %v1117 = vadd.f32 %v1116, -0.4999988
        %v1118 = vmul.f32 %v1113, %v1117
        %v1119 = vadd.f32 1.0, %v1118
        %v1120 = vmul.f32 %v1111, %v1111
        %v1121 = vmul.f32 %v1120, -0.00019511016
        %v1122 = vadd.f32 %v1121, 0.008332121
        %v1123 = vmul.f32 %v1120, %v1122
        %v1124 = vadd.f32 %v1123, -0.16666654
        %v1125 = vmul.f32 %v1120, %v1124
        %v1126 = vadd.f32 %v1125, 1.0
        %v1127 = vmul.f32 %v1126, %v1111
        %vm1128 = vweird.f32 %v357
        %v1129 = vadd.s32 %v1112, 3
        %v1130 = vand.u32 %v1129, 3
        %vm1131 = vcmp.lt.s32.totalorder %v1130, 2
        %vm1132 = vcmp.eq.s32.totalorder %v1130, 0
        %v1133 = vxor.u32 %v1127, 2147483648
        %v1134 = vsel %vm1132, %v1119, %v1133
        %vm1135 = vcmp.eq.s32.totalorder %v1130, 2
        %v1136 = vxor.u32 %v1119, 2147483648
        %v1137 = vsel %vm1135, %v1136, %v1127
        %v1138 = vsel %vm1131, %v1134, %v1137
        %v1139 = vsel %vm1128, nan, %v1138
        %v1140 = vand.u32 2147483647, %v359
        %vm1141 = vcmp.le.f32.partialorder %v1140, 0.7853982
        %vm1142 = vcmp.lt.s32.totalorder %v359, 0
        %v1143 = vand.u32 %v359, 2139095040
        %v1144 = vshrl.u32 %v1143, 23
        %v1145 = vsub.s32 %v1144, 127
        %v1146 = vand.u32 2147483647, %v359
        %v1147 = vand.u32 %v1146, 8388607
        %v1148 = vor.u32 %v1147, 8388608
        %v1149 = vsub.s32 0, %v1148
        %v1150 = vadd.s32 %v1145, 1
        %vm1151 = vcmp.gt.s32.totalorder %v1150, 0
        %v1152 = vsel %vm1151, %v1150, 0
        %v1153 = vshrl.u32 %v1152, 5
        %v1154 = vand.u32 %v1152, 31
        %v1155 = vsub.s32 32, %v1154
        %v1156 = vshrl.u32 683565275, %v1155
        %v1157 = vshll.u32 683565275, %v1154
        %v1158 = vshrl.u32 2475754826, %v1155
        %v1159 = vor.u32 %v1157, %v1158
        %v1160 = vshll.u32 2475754826, %v1154
        %v1161 = vshrl.u32 2131351028, %v1155
        %v1162 = vor.u32 %v1160, %v1161
        %v1163 = vshll.u32 2131351028, %v1154
        %v1164 = vshrl.u32 2102212464, %v1155
        %v1165 = vor.u32 %v1163, %v1164
        %v1166 = vshll.u32 2102212464, %v1154
        %v1167 = vshrl.u32 920167782, %v1155
        %v1168 = vor.u32 %v1166, %v1167
        %v1169 = vshll.u32 920167782, %v1154
        %v1170 = vshrl.u32 1326507024, %v1155
        %v1171 = vor.u32 %v1169, %v1170
        %vm1172 = vcmp.lt.s32.totalorder %v1153, 1
        %vm1173 = vcmp.lt.s32.totalorder %v1153, 2
        %vm1174 = vcmp.lt.s32.totalorder %v1153, 3
        %vm1175 = vcmp.lt.s32.totalorder %v1153, 4
        %v1176 = vsel %vm1172, %v1156, %v1159
        %v1177 = vsel %vm1175, %v1165, 2102212464
        %v1178 = vsel %vm1174, %v1162, %v1177
        %v1179 = vsel %vm1173, %v1176, %v1178
        %v1180 = vsel %vm1172, %v1159, %v1162
        %v1181 = vsel %vm1175, %v1168, 920167782
        %v1182 = vsel %vm1174, %v1165, %v1181
        %v1183 = vsel %vm1173, %v1180, %v1182
        %v1184 = vsel %vm1172, %v1162, %v1165
        %v1185 = vsel %vm1175, %v1171, 1326507024
        %v1186 = vsel %vm1174, %v1168, %v1185
        %v1187 = vsel %vm1173, %v1184, %v1186
        %v1188 = vshll.u32 %v1148, 8
        %v1189 = vand.u32 %v1188, 65535
        %v1190 = vshrl.u32 %v1188, 16
        %v1191 = vand.u32 %v1187, 65535
        %v1192 = vshrl.u32 %v1187, 16
        %v1193 = vmul.u32 %v1189, %v1191
        %v1194 = vmul.u32 %v1189, %v1192
        %v1195 = vmul.u32 %v1190, %v1191
        %v1196 = vmul.u32 %v1190, %v1192
        %v1197 = vshll.u32 %v1194, 16
        %v1198 = vshrl.u32 %v1194, 16
        %v1199 = vshll.u32 %v1195, 16
        %v1200 = vshrl.u32 %v1195, 16
        %vm1201 = vc.u32 %v1193, %v1197
        %v1202 = vsel %vm1201, 1, 0
        %v1203 = vadd.s32 %v1193, %v1197
        %v1204 = vadd.s32 %v1196, %v1202
        %vm1205 = vc.u32 %v1203, %v1199
        %v1206 = vsel %vm1205, 1, 0
        %v1207 = vadd.s32 %v1203, %v1199
        %v1208 = vadd.s32 %v1204, %v1206
        %v1209 = vadd.s32 %v1208, %v1198
        %v1210 = vadd.s32 %v1209, %v1200
        %v1211 = vand.u32 %v1188, 65535
        %v1212 = vshrl.u32 %v1188, 16
        %v1213 = vand.u32 %v1183, 65535
        %v1214 = vshrl.u32 %v1183, 16
        %v1215 = vmul.u32 %v1211, %v1213
        %v1216 = vmul.u32 %v1211, %v1214
        %v1217 = vmul.u32 %v1212, %v1213
        %v1218 = vmul.u32 %v1212, %v1214
        %v1219 = vshll.u32 %v1216, 16
        %v1220 = vshrl.u32 %v1216, 16
        %v1221 = vshll.u32 %v1217, 16
        %v1222 = vshrl.u32 %v1217, 16
        %vm1223 = vc.u32 %v1215, %v1219
        %v1224 = vsel %vm1223, 1, 0
        %v1225 = vadd.s32 %v1215, %v1219
        %v1226 = vadd.s32 %v1218, %v1224
        %vm1227 = vc.u32 %v1225, %v1221
        %v1228 = vsel %vm1227, 1, 0
        %v1229 = vadd.s32 %v1225, %v1221
        %v1230 = vadd.s32 %v1226, %v1228
        %v1231 = vadd.s32 %v1230, %v1220
        %v1232 = vadd.s32 %v1231, %v1222
        %v1233 = vmul.u32 %v1188, %v1179
        %v1234 = vadd.s32 %v1210, %v1229
        %vm1235 = vc.u32 %v1210, %v1229
        %v1236 = vadd.s32 %v1232, 1
        %v1237 = vsel %vm1235, %v1236, %v1232
        %v1238 = vadd.s32 %v1233, %v1237
        %v1239 = vadd.s32 %v1238, 536870912
        %v1240 = vshrl.u32 %v1239, 30
        %v1241 = vshll.u32 %v1240, 30
        %v1242 = vsub.s32 %v1238, %v1241
        %vm1243 = vcmp.lt.s32.totalorder %v1242, 0
        %v1244 = vsub.s32 0, %v1242
        %v1245 = vsel %vm1243, %v1244, %v1242
        %v1246 = vclz %v1245
        %v1247 = vsub.s32 %v1246, 2
        %vm1248 = vcmp.gt.s32.totalorder 0, %v1247
        %v1249 = vsel %vm1248, 0, %v1247
        %v1250 = vsub.s32 32, %v1249
        %v1251 = vshll.u32 %v1242, %v1249
        %v1252 = vshrl.u32 %v1234, %v1250
        %v1253 = vor.u32 %v1251, %v1252
        %v1254 = vsub.s32 4294967266, %v1249
        %v1255 = vadd.s32 %v1254, 127
        %v1256 = vshll.u32 %v1255, 23
        %v1257 = vor.u32 4788187, %v1256
        %v1258 = vand.u32 2147483647, %v1257
        %v1260 = vcvt.s32.f32 %v1253
        %v1261 = vmul.f32 %v1260, %v1258
        %v1262 = vxor.u32 %v1261, 2147483648
        %v1263 = vsel %vm1142, %v1262, %v1261
        %v1264 = vsub.s32 4, %v1240
        %v1265 = vsel %vm1142, %v1264, %v1240
        %v1266 = vsel %vm1141, %v359, %v1263
        %v1267 = vsel %vm1141, 0, %v1265
        %v1268 = vmul.f32 %v1266, %v1266
        %v1269 = vmul.f32 %v1268, -0.001358992
        %v1270 = vadd.f32 %v1269, 0.041655596
        %v1271 = vmul.f32 %v1268, %v1270
        %v1272 = vadd.f32 %v1271, -0.4999988
        %v1273 = vmul.f32 %v1268, %v1272
        %v1274 = vadd.f32 1.0, %v1273
        %v1275 = vmul.f32 %v1266, %v1266
        %v1276 = vmul.f32 %v1275, -0.00019511016
        %v1277 = vadd.f32 %v1276, 0.008332121
        %v1278 = vmul.f32 %v1275, %v1277
        %v1279 = vadd.f32 %v1278, -0.16666654
        %v1280 = vmul.f32 %v1275, %v1279
        %v1281 = vadd.f32 %v1280, 1.0
        %v1282 = vmul.f32 %v1281, %v1266
        %vm1283 = vweird.f32 %v359
        %v1284 = vadd.s32 %v1267, 3
        %v1285 = vand.u32 %v1284, 3
        %vm1286 = vcmp.lt.s32.totalorder %v1285, 2
        %vm1287 = vcmp.eq.s32.totalorder %v1285, 0
        %v1288 = vxor.u32 %v1282, 2147483648
        %v1289 = vsel %vm1287, %v1274, %v1288
        %vm1290 = vcmp.eq.s32.totalorder %v1285, 2
        %v1291 = vxor.u32 %v1274, 2147483648
        %v1292 = vsel %vm1290, %v1291, %v1282
        %v1293 = vsel %vm1286, %v1289, %v1292
        %v1294 = vsel %vm1283, nan, %v1293
        %v1295 = vand.u32 2147483647, %v357
        %vm1296 = vcmp.le.f32.partialorder %v1295, 0.7853982
        %vm1297 = vcmp.lt.s32.totalorder %v357, 0
        %v1298 = vand.u32 %v357, 2139095040
        %v1299 = vshrl.u32 %v1298, 23
        %v1300 = vsub.s32 %v1299, 127
        %v1301 = vand.u32 2147483647, %v357
        %v1302 = vand.u32 %v1301, 8388607
        %v1303 = vor.u32 %v1302, 8388608
        %v1304 = vsub.s32 0, %v1303
        %v1305 = vadd.s32 %v1300, 1
        %vm1306 = vcmp.gt.s32.totalorder %v1305, 0
        %v1307 = vsel %vm1306, %v1305, 0
        %v1308 = vshrl.u32 %v1307, 5
        %v1309 = vand.u32 %v1307, 31
        %v1310 = vsub.s32 32, %v1309
        %v1311 = vshrl.u32 683565275, %v1310
        %v1312 = vshll.u32 683565275, %v1309
        %v1313 = vshrl.u32 2475754826, %v1310
        %v1314 = vor.u32 %v1312, %v1313
        %v1315 = vshll.u32 2475754826, %v1309
        %v1316 = vshrl.u32 2131351028, %v1310
        %v1317 = vor.u32 %v1315, %v1316
        %v1318 = vshll.u32 2131351028, %v1309
        %v1319 = vshrl.u32 2102212464, %v1310
        %v1320 = vor.u32 %v1318, %v1319
        %v1321 = vshll.u32 2102212464, %v1309
        %v1322 = vshrl.u32 920167782, %v1310
        %v1323 = vor.u32 %v1321, %v1322
        %v1324 = vshll.u32 920167782, %v1309
        %v1325 = vshrl.u32 1326507024, %v1310
        %v1326 = vor.u32 %v1324, %v1325
        %vm1327 = vcmp.lt.s32.totalorder %v1308, 1
        %vm1328 = vcmp.lt.s32.totalorder %v1308, 2
        %vm1329 = vcmp.lt.s32.totalorder %v1308, 3
        %vm1330 = vcmp.lt.s32.totalorder %v1308, 4
        %v1331 = vsel %vm1327, %v1311, %v1314
        %v1332 = vsel %vm1330, %v1320, 2102212464
        %v1333 = vsel %vm1329, %v1317, %v1332
        %v1334 = vsel %vm1328, %v1331, %v1333
        %v1335 = vsel %vm1327, %v1314, %v1317
        %v1336 = vsel %vm1330, %v1323, 920167782
        %v1337 = vsel %vm1329, %v1320, %v1336
        %v1338 = vsel %vm1328, %v1335, %v1337
        %v1339 = vsel %vm1327, %v1317, %v1320
        %v1340 = vsel %vm1330, %v1326, 1326507024
        %v1341 = vsel %vm1329, %v1323, %v1340
        %v1342 = vsel %vm1328, %v1339, %v1341
        %v1343 = vshll.u32 %v1303, 8
        %v1344 = vand.u32 %v1343, 65535
        %v1345 = vshrl.u32 %v1343, 16
        %v1346 = vand.u32 %v1342, 65535
        %v1347 = vshrl.u32 %v1342, 16
        %v1348 = vmul.u32 %v1344, %v1346
        %v1349 = vmul.u32 %v1344, %v1347
        %v1350 = vmul.u32 %v1345, %v1346
        %v1351 = vmul.u32 %v1345, %v1347
        %v1352 = vshll.u32 %v1349, 16
        %v1353 = vshrl.u32 %v1349, 16
        %v1354 = vshll.u32 %v1350, 16
        %v1355 = vshrl.u32 %v1350, 16
        %vm1356 = vc.u32 %v1348, %v1352
        %v1357 = vsel %vm1356, 1, 0
        %v1358 = vadd.s32 %v1348, %v1352
        %v1359 = vadd.s32 %v1351, %v1357
        %vm1360 = vc.u32 %v1358, %v1354
        %v1361 = vsel %vm1360, 1, 0
        %v1362 = vadd.s32 %v1358, %v1354
        %v1363 = vadd.s32 %v1359, %v1361
        %v1364 = vadd.s32 %v1363, %v1353
        %v1365 = vadd.s32 %v1364, %v1355
        %v1366 = vand.u32 %v1343, 65535
        %v1367 = vshrl.u32 %v1343, 16
        %v1368 = vand.u32 %v1338, 65535
        %v1369 = vshrl.u32 %v1338, 16
        %v1370 = vmul.u32 %v1366, %v1368
        %v1371 = vmul.u32 %v1366, %v1369
        %v1372 = vmul.u32 %v1367, %v1368
        %v1373 = vmul.u32 %v1367, %v1369
        %v1374 = vshll.u32 %v1371, 16
        %v1375 = vshrl.u32 %v1371, 16
        %v1376 = vshll.u32 %v1372, 16
        %v1377 = vshrl.u32 %v1372, 16
        %vm1378 = vc.u32 %v1370, %v1374
        %v1379 = vsel %vm1378, 1, 0
        %v1380 = vadd.s32 %v1370, %v1374
        %v1381 = vadd.s32 %v1373, %v1379
        %vm1382 = vc.u32 %v1380, %v1376
        %v1383 = vsel %vm1382, 1, 0
        %v1384 = vadd.s32 %v1380, %v1376
        %v1385 = vadd.s32 %v1381, %v1383
        %v1386 = vadd.s32 %v1385, %v1375
        %v1387 = vadd.s32 %v1386, %v1377
        %v1388 = vmul.u32 %v1343, %v1334
        %v1389 = vadd.s32 %v1365, %v1384
        %vm1390 = vc.u32 %v1365, %v1384
        %v1391 = vadd.s32 %v1387, 1
        %v1392 = vsel %vm1390, %v1391, %v1387
        %v1393 = vadd.s32 %v1388, %v1392
        %v1394 = vadd.s32 %v1393, 536870912
        %v1395 = vshrl.u32 %v1394, 30
        %v1396 = vshll.u32 %v1395, 30
        %v1397 = vsub.s32 %v1393, %v1396
        %vm1398 = vcmp.lt.s32.totalorder %v1397, 0
        %v1399 = vsub.s32 0, %v1397
        %v1400 = vsel %vm1398, %v1399, %v1397
        %v1401 = vclz %v1400
        %v1402 = vsub.s32 %v1401, 2
        %vm1403 = vcmp.gt.s32.totalorder 0, %v1402
        %v1404 = vsel %vm1403, 0, %v1402
        %v1405 = vsub.s32 32, %v1404
        %v1406 = vshll.u32 %v1397, %v1404
        %v1407 = vshrl.u32 %v1389, %v1405
        %v1408 = vor.u32 %v1406, %v1407
        %v1409 = vsub.s32 4294967266, %v1404
        %v1410 = vadd.s32 %v1409, 127
        %v1411 = vshll.u32 %v1410, 23
        %v1412 = vor.u32 4788187, %v1411
        %v1413 = vand.u32 2147483647, %v1412
        %v1415 = vcvt.s32.f32 %v1408
        %v1416 = vmul.f32 %v1415, %v1413
        %v1417 = vxor.u32 %v1416, 2147483648
        %v1418 = vsel %vm1297, %v1417, %v1416
        %v1419 = vsub.s32 4, %v1395
        %v1420 = vsel %vm1297, %v1419, %v1395
        %v1421 = vsel %vm1296, %v357, %v1418
        %v1422 = vsel %vm1296, 0, %v1420
        %v1423 = vmul.f32 %v1421, %v1421
        %v1424 = vmul.f32 %v1423, -0.001358992
        %v1425 = vadd.f32 %v1424, 0.041655596
        %v1426 = vmul.f32 %v1423, %v1425
        %v1427 = vadd.f32 %v1426, -0.4999988
        %v1428 = vmul.f32 %v1423, %v1427
        %v1429 = vadd.f32 1.0, %v1428
        %v1430 = vmul.f32 %v1421, %v1421
        %v1431 = vmul.f32 %v1430, -0.00019511016
        %v1432 = vadd.f32 %v1431, 0.008332121
        %v1433 = vmul.f32 %v1430, %v1432
        %v1434 = vadd.f32 %v1433, -0.16666654
        %v1435 = vmul.f32 %v1430, %v1434
        %v1436 = vadd.f32 %v1435, 1.0
        %v1437 = vmul.f32 %v1436, %v1421
        %vm1438 = vweird.f32 %v357
        %v1439 = vand.u32 %v1422, 3
        %vm1440 = vcmp.lt.s32.totalorder %v1439, 2
        %vm1441 = vcmp.eq.s32.totalorder %v1439, 0
        %v1442 = vxor.u32 %v1437, 2147483648
        %v1443 = vsel %vm1441, %v1429, %v1442
        %vm1444 = vcmp.eq.s32.totalorder %v1439, 2
        %v1445 = vxor.u32 %v1429, 2147483648
        %v1446 = vsel %vm1444, %v1445, %v1437
        %v1447 = vsel %vm1440, %v1443, %v1446
        %v1448 = vsel %vm1438, nan, %v1447
        %v1449 = vand.u32 2147483647, %v359
        %vm1450 = vcmp.le.f32.partialorder %v1449, 0.7853982
        %vm1451 = vcmp.lt.s32.totalorder %v359, 0
        %v1452 = vand.u32 %v359, 2139095040
        %v1453 = vshrl.u32 %v1452, 23
        %v1454 = vsub.s32 %v1453, 127
        %v1455 = vand.u32 2147483647, %v359
        %v1456 = vand.u32 %v1455, 8388607
        %v1457 = vor.u32 %v1456, 8388608
        %v1458 = vsub.s32 0, %v1457
        %v1459 = vadd.s32 %v1454, 1
        %vm1460 = vcmp.gt.s32.totalorder %v1459, 0
        %v1461 = vsel %vm1460, %v1459, 0
        %v1462 = vshrl.u32 %v1461, 5
        %v1463 = vand.u32 %v1461, 31
        %v1464 = vsub.s32 32, %v1463
        %v1465 = vshrl.u32 683565275, %v1464
        %v1466 = vshll.u32 683565275, %v1463
        %v1467 = vshrl.u32 2475754826, %v1464
        %v1468 = vor.u32 %v1466, %v1467
        %v1469 = vshll.u32 2475754826, %v1463
        %v1470 = vshrl.u32 2131351028, %v1464
        %v1471 = vor.u32 %v1469, %v1470
        %v1472 = vshll.u32 2131351028, %v1463
        %v1473 = vshrl.u32 2102212464, %v1464
        %v1474 = vor.u32 %v1472, %v1473
        %v1475 = vshll.u32 2102212464, %v1463
        %v1476 = vshrl.u32 920167782, %v1464
        %v1477 = vor.u32 %v1475, %v1476
        %v1478 = vshll.u32 920167782, %v1463
        %v1479 = vshrl.u32 1326507024, %v1464
        %v1480 = vor.u32 %v1478, %v1479
        %vm1481 = vcmp.lt.s32.totalorder %v1462, 1
        %vm1482 = vcmp.lt.s32.totalorder %v1462, 2
        %vm1483 = vcmp.lt.s32.totalorder %v1462, 3
        %vm1484 = vcmp.lt.s32.totalorder %v1462, 4
        %v1485 = vsel %vm1481, %v1465, %v1468
        %v1486 = vsel %vm1484, %v1474, 2102212464
        %v1487 = vsel %vm1483, %v1471, %v1486
        %v1488 = vsel %vm1482, %v1485, %v1487
        %v1489 = vsel %vm1481, %v1468, %v1471
        %v1490 = vsel %vm1484, %v1477, 920167782
        %v1491 = vsel %vm1483, %v1474, %v1490
        %v1492 = vsel %vm1482, %v1489, %v1491
        %v1493 = vsel %vm1481, %v1471, %v1474
        %v1494 = vsel %vm1484, %v1480, 1326507024
        %v1495 = vsel %vm1483, %v1477, %v1494
        %v1496 = vsel %vm1482, %v1493, %v1495
        %v1497 = vshll.u32 %v1457, 8
        %v1498 = vand.u32 %v1497, 65535
        %v1499 = vshrl.u32 %v1497, 16
        %v1500 = vand.u32 %v1496, 65535
        %v1501 = vshrl.u32 %v1496, 16
        %v1502 = vmul.u32 %v1498, %v1500
        %v1503 = vmul.u32 %v1498, %v1501
        %v1504 = vmul.u32 %v1499, %v1500
        %v1505 = vmul.u32 %v1499, %v1501
        %v1506 = vshll.u32 %v1503, 16
        %v1507 = vshrl.u32 %v1503, 16
        %v1508 = vshll.u32 %v1504, 16
        %v1509 = vshrl.u32 %v1504, 16
        %vm1510 = vc.u32 %v1502, %v1506
        %v1511 = vsel %vm1510, 1, 0
        %v1512 = vadd.s32 %v1502, %v1506
        %v1513 = vadd.s32 %v1505, %v1511
        %vm1514 = vc.u32 %v1512, %v1508
        %v1515 = vsel %vm1514, 1, 0
        %v1516 = vadd.s32 %v1512, %v1508
        %v1517 = vadd.s32 %v1513, %v1515
        %v1518 = vadd.s32 %v1517, %v1507
        %v1519 = vadd.s32 %v1518, %v1509
        %v1520 = vand.u32 %v1497, 65535
        %v1521 = vshrl.u32 %v1497, 16
        %v1522 = vand.u32 %v1492, 65535
        %v1523 = vshrl.u32 %v1492, 16
        %v1524 = vmul.u32 %v1520, %v1522
        %v1525 = vmul.u32 %v1520, %v1523
        %v1526 = vmul.u32 %v1521, %v1522
        %v1527 = vmul.u32 %v1521, %v1523
        %v1528 = vshll.u32 %v1525, 16
        %v1529 = vshrl.u32 %v1525, 16
        %v1530 = vshll.u32 %v1526, 16
        %v1531 = vshrl.u32 %v1526, 16
        %vm1532 = vc.u32 %v1524, %v1528
        %v1533 = vsel %vm1532, 1, 0
        %v1534 = vadd.s32 %v1524, %v1528
        %v1535 = vadd.s32 %v1527, %v1533
        %vm1536 = vc.u32 %v1534, %v1530
        %v1537 = vsel %vm1536, 1, 0
        %v1538 = vadd.s32 %v1534, %v1530
        %v1539 = vadd.s32 %v1535, %v1537
        %v1540 = vadd.s32 %v1539, %v1529
        %v1541 = vadd.s32 %v1540, %v1531
        %v1542 = vmul.u32 %v1497, %v1488
        %v1543 = vadd.s32 %v1519, %v1538
        %vm1544 = vc.u32 %v1519, %v1538
        %v1545 = vadd.s32 %v1541, 1
        %v1546 = vsel %vm1544, %v1545, %v1541
        %v1547 = vadd.s32 %v1542, %v1546
        %v1548 = vadd.s32 %v1547, 536870912
        %v1549 = vshrl.u32 %v1548, 30
        %v1550 = vshll.u32 %v1549, 30
        %v1551 = vsub.s32 %v1547, %v1550
        %vm1552 = vcmp.lt.s32.totalorder %v1551, 0
        %v1553 = vsub.s32 0, %v1551
        %v1554 = vsel %vm1552, %v1553, %v1551
        %v1555 = vclz %v1554
        %v1556 = vsub.s32 %v1555, 2
        %vm1557 = vcmp.gt.s32.totalorder 0, %v1556
        %v1558 = vsel %vm1557, 0, %v1556
        %v1559 = vsub.s32 32, %v1558
        %v1560 = vshll.u32 %v1551, %v1558
        %v1561 = vshrl.u32 %v1543, %v1559
        %v1562 = vor.u32 %v1560, %v1561
        %v1563 = vsub.s32 4294967266, %v1558
        %v1564 = vadd.s32 %v1563, 127
        %v1565 = vshll.u32 %v1564, 23
        %v1566 = vor.u32 4788187, %v1565
        %v1567 = vand.u32 2147483647, %v1566
        %v1569 = vcvt.s32.f32 %v1562
        %v1570 = vmul.f32 %v1569, %v1567
        %v1571 = vxor.u32 %v1570, 2147483648
        %v1572 = vsel %vm1451, %v1571, %v1570
        %v1573 = vsub.s32 4, %v1549
        %v1574 = vsel %vm1451, %v1573, %v1549
        %v1575 = vsel %vm1450, %v359, %v1572
        %v1576 = vsel %vm1450, 0, %v1574
        %v1577 = vmul.f32 %v1575, %v1575
        %v1578 = vmul.f32 %v1577, -0.001358992
        %v1579 = vadd.f32 %v1578, 0.041655596
        %v1580 = vmul.f32 %v1577, %v1579
        %v1581 = vadd.f32 %v1580, -0.4999988
        %v1582 = vmul.f32 %v1577, %v1581
        %v1583 = vadd.f32 1.0, %v1582
        %v1584 = vmul.f32 %v1575, %v1575
        %v1585 = vmul.f32 %v1584, -0.00019511016
        %v1586 = vadd.f32 %v1585, 0.008332121
        %v1587 = vmul.f32 %v1584, %v1586
        %v1588 = vadd.f32 %v1587, -0.16666654
        %v1589 = vmul.f32 %v1584, %v1588
        %v1590 = vadd.f32 %v1589, 1.0
        %v1591 = vmul.f32 %v1590, %v1575
        %vm1592 = vweird.f32 %v359
        %v1593 = vand.u32 %v1576, 3
        %vm1594 = vcmp.lt.s32.totalorder %v1593, 2
        %vm1595 = vcmp.eq.s32.totalorder %v1593, 0
        %v1596 = vxor.u32 %v1591, 2147483648
        %v1597 = vsel %vm1595, %v1583, %v1596
        %vm1598 = vcmp.eq.s32.totalorder %v1593, 2
        %v1599 = vxor.u32 %v1583, 2147483648
        %v1600 = vsel %vm1598, %v1599, %v1591
        %v1601 = vsel %vm1594, %v1597, %v1600
        %v1602 = vsel %vm1592, nan, %v1601
        %v1603 = vld [vmem:[#allocation9] sm:$0xff]
        %v1604 = vld [vmem:[#allocation9 + $0x8] sm:$0xff]
        %v1605 = vld [vmem:[#allocation9 + $0x10] sm:$0xff]
        %v1606 = vld [vmem:[#allocation9 + $0x18] sm:$0xff]
        %v1607 = vld [vmem:[#allocation10] sm:$0xff]
        %v1608 = vld [vmem:[#allocation10 + $0x8] sm:$0xff]
        %v1609 = vld [vmem:[#allocation10 + $0x10] sm:$0xff]
        %v1610 = vld [vmem:[#allocation10 + $0x18] sm:$0xff]
        %vm1611 = vcmask 130048
        %v1613 = vsel %vm1611, %v521, 0
        %v1616 = vsel %vm1611, %v676, 0
        %1618 = vmatpush.msra.mxu0 0.0
        %1619 = vmatpush.msra.mxu0 0.0
        %1620 = vmatpush.msra.mxu0 0.0
        %1621 = vmatpush.msra.mxu0 0.0
        %1622 = vmatpush.msra.mxu0 0.0
        %1623 = vmatpush.msra.mxu0 0.0
        %1624 = vmatpush.msra.mxu0 0.0
        %1625 = vmatpush.msra.mxu0 0.0
        %1626 = vmatpush.msra.mxu0 0.0
        %1627 = vmatpush.msra.mxu0 0.0
        %1628 = vmatpush.msra.mxu0 0.0
        %1629 = vmatpush.msra.mxu0 0.0
        %1630 = vmatpush.msra.mxu0 0.0
        %1631 = vmatpush.msra.mxu0 0.0
        %1632 = vmatpush.msra.mxu0 %v1605
        %1633 = vmatpush.msra.mxu0 %v1603
        %1634 = vmatmul.f32.gmra.mxu0 %v1613
        %v1635 = vpop.f32.mrf.mxu0
        %v1636 = vadd.f32 0.0, %v1635
        %1637 = vmatmul.f32.gmra.mxu0 %v1616
        %v1638 = vpop.f32.mrf.mxu0
        %v1639 = vadd.f32 0.0, %v1638
        %1640 = vdwg.mxu0
        %1641 = vmatpush.msra.mxu0 0.0
        %1642 = vmatpush.msra.mxu0 0.0
        %1643 = vmatpush.msra.mxu0 0.0
        %1644 = vmatpush.msra.mxu0 0.0
        %1645 = vmatpush.msra.mxu0 0.0
        %1646 = vmatpush.msra.mxu0 0.0
        %1647 = vmatpush.msra.mxu0 0.0
        %1648 = vmatpush.msra.mxu0 0.0
        %1649 = vmatpush.msra.mxu0 0.0
        %1650 = vmatpush.msra.mxu0 0.0
        %1651 = vmatpush.msra.mxu0 0.0
        %1652 = vmatpush.msra.mxu0 0.0
        %1653 = vmatpush.msra.mxu0 0.0
        %1654 = vmatpush.msra.mxu0 0.0
        %1655 = vmatpush.msra.mxu0 %v1606
        %1656 = vmatpush.msra.mxu0 %v1604
        %1657 = vmatmul.f32.gmra.mxu0 %v1613
        %v1658 = vpop.f32.mrf.mxu0
        %v1659 = vadd.f32 0.0, %v1658
        %1660 = vmatmul.f32.gmra.mxu0 %v1616
        %v1661 = vpop.f32.mrf.mxu0
        %v1662 = vadd.f32 0.0, %v1661
        %1663 = vdwg.mxu0
        %v1665 = vsel %vm1611, %v830, 0
        %v1668 = vsel %vm1611, %v984, 0
        %1670 = vmatpush.msra.mxu0 0.0
        %1671 = vmatpush.msra.mxu0 0.0
        %1672 = vmatpush.msra.mxu0 0.0
        %1673 = vmatpush.msra.mxu0 0.0
        %1674 = vmatpush.msra.mxu0 0.0
        %1675 = vmatpush.msra.mxu0 0.0
        %1676 = vmatpush.msra.mxu0 0.0
        %1677 = vmatpush.msra.mxu0 0.0
        %1678 = vmatpush.msra.mxu0 0.0
        %1679 = vmatpush.msra.mxu0 0.0
        %1680 = vmatpush.msra.mxu0 0.0
        %1681 = vmatpush.msra.mxu0 0.0
        %1682 = vmatpush.msra.mxu0 0.0
        %1683 = vmatpush.msra.mxu0 0.0
        %1684 = vmatpush.msra.mxu0 %v1605
        %1685 = vmatpush.msra.mxu0 %v1603
        %1686 = vmatmul.f32.gmra.mxu0 %v1665
        %v1687 = vpop.f32.mrf.mxu0
        %v1688 = vadd.f32 0.0, %v1687
        %1689 = vmatmul.f32.gmra.mxu0 %v1668
        %v1690 = vpop.f32.mrf.mxu0
        %v1691 = vadd.f32 0.0, %v1690
        %1692 = vdwg.mxu0
        %1693 = vmatpush.msra.mxu0 0.0
        %1694 = vmatpush.msra.mxu0 0.0
        %1695 = vmatpush.msra.mxu0 0.0
        %1696 = vmatpush.msra.mxu0 0.0
        %1697 = vmatpush.msra.mxu0 0.0
        %1698 = vmatpush.msra.mxu0 0.0
        %1699 = vmatpush.msra.mxu0 0.0
        %1700 = vmatpush.msra.mxu0 0.0
        %1701 = vmatpush.msra.mxu0 0.0
        %1702 = vmatpush.msra.mxu0 0.0
        %1703 = vmatpush.msra.mxu0 0.0
        %1704 = vmatpush.msra.mxu0 0.0
        %1705 = vmatpush.msra.mxu0 0.0
        %1706 = vmatpush.msra.mxu0 0.0
        %1707 = vmatpush.msra.mxu0 %v1606
        %1708 = vmatpush.msra.mxu0 %v1604
        %1709 = vmatmul.f32.gmra.mxu0 %v1665
        %v1710 = vpop.f32.mrf.mxu0
        %v1711 = vadd.f32 0.0, %v1710
        %1712 = vmatmul.f32.gmra.mxu0 %v1668
        %v1713 = vpop.f32.mrf.mxu0
        %v1714 = vadd.f32 0.0, %v1713
        %1715 = vdwg.mxu0
        %v1717 = vsel %vm1611, %v1139, 0
        %v1720 = vsel %vm1611, %v1294, 0
        %1722 = vmatpush.msra.mxu0 0.0
        %1723 = vmatpush.msra.mxu0 0.0
        %1724 = vmatpush.msra.mxu0 0.0
        %1725 = vmatpush.msra.mxu0 0.0
        %1726 = vmatpush.msra.mxu0 0.0
        %1727 = vmatpush.msra.mxu0 0.0
        %1728 = vmatpush.msra.mxu0 0.0
        %1729 = vmatpush.msra.mxu0 0.0
        %1730 = vmatpush.msra.mxu0 0.0
        %1731 = vmatpush.msra.mxu0 0.0
        %1732 = vmatpush.msra.mxu0 0.0
        %1733 = vmatpush.msra.mxu0 0.0
        %1734 = vmatpush.msra.mxu0 0.0
        %1735 = vmatpush.msra.mxu0 0.0
        %1736 = vmatpush.msra.mxu0 %v1609
        %1737 = vmatpush.msra.mxu0 %v1607
        %1738 = vmatmul.f32.gmra.mxu0 %v1717
        %v1739 = vpop.f32.mrf.mxu0
        %v1740 = vadd.f32 0.0, %v1739
        %1741 = vmatmul.f32.gmra.mxu0 %v1720
        %v1742 = vpop.f32.mrf.mxu0
        %v1743 = vadd.f32 0.0, %v1742
        %1744 = vdwg.mxu0
        %1745 = vmatpush.msra.mxu0 0.0
        %1746 = vmatpush.msra.mxu0 0.0
        %1747 = vmatpush.msra.mxu0 0.0
        %1748 = vmatpush.msra.mxu0 0.0
        %1749 = vmatpush.msra.mxu0 0.0
        %1750 = vmatpush.msra.mxu0 0.0
        %1751 = vmatpush.msra.mxu0 0.0
        %1752 = vmatpush.msra.mxu0 0.0
        %1753 = vmatpush.msra.mxu0 0.0
        %1754 = vmatpush.msra.mxu0 0.0
        %1755 = vmatpush.msra.mxu0 0.0
        %1756 = vmatpush.msra.mxu0 0.0
        %1757 = vmatpush.msra.mxu0 0.0
        %1758 = vmatpush.msra.mxu0 0.0
        %1759 = vmatpush.msra.mxu0 %v1610
        %1760 = vmatpush.msra.mxu0 %v1608
        %1761 = vmatmul.f32.gmra.mxu0 %v1717
        %v1762 = vpop.f32.mrf.mxu0
        %v1763 = vadd.f32 0.0, %v1762
        %1764 = vmatmul.f32.gmra.mxu0 %v1720
        %v1765 = vpop.f32.mrf.mxu0
        %v1766 = vadd.f32 0.0, %v1765
        %1767 = vdwg.mxu0
        %v1769 = vsel %vm1611, %v1448, 0
        %v1772 = vsel %vm1611, %v1602, 0
        %1774 = vmatpush.msra.mxu0 0.0
        %1775 = vmatpush.msra.mxu0 0.0
        %1776 = vmatpush.msra.mxu0 0.0
        %1777 = vmatpush.msra.mxu0 0.0
        %1778 = vmatpush.msra.mxu0 0.0
        %1779 = vmatpush.msra.mxu0 0.0
        %1780 = vmatpush.msra.mxu0 0.0
        %1781 = vmatpush.msra.mxu0 0.0
        %1782 = vmatpush.msra.mxu0 0.0
        %1783 = vmatpush.msra.mxu0 0.0
        %1784 = vmatpush.msra.mxu0 0.0
        %1785 = vmatpush.msra.mxu0 0.0
        %1786 = vmatpush.msra.mxu0 0.0
        %1787 = vmatpush.msra.mxu0 0.0
        %1788 = vmatpush.msra.mxu0 %v1609
        %1789 = vmatpush.msra.mxu0 %v1607
        %1790 = vmatmul.f32.gmra.mxu0 %v1769
        %v1791 = vpop.f32.mrf.mxu0
        %v1792 = vadd.f32 0.0, %v1791
        %1793 = vmatmul.f32.gmra.mxu0 %v1772
        %v1794 = vpop.f32.mrf.mxu0
        %v1795 = vadd.f32 0.0, %v1794
        %1796 = vdwg.mxu0
        %1797 = vmatpush.msra.mxu0 0.0
        %1798 = vmatpush.msra.mxu0 0.0
        %1799 = vmatpush.msra.mxu0 0.0
        %1800 = vmatpush.msra.mxu0 0.0
        %1801 = vmatpush.msra.mxu0 0.0
        %1802 = vmatpush.msra.mxu0 0.0
        %1803 = vmatpush.msra.mxu0 0.0
        %1804 = vmatpush.msra.mxu0 0.0
        %1805 = vmatpush.msra.mxu0 0.0
        %1806 = vmatpush.msra.mxu0 0.0
        %1807 = vmatpush.msra.mxu0 0.0
        %1808 = vmatpush.msra.mxu0 0.0
        %1809 = vmatpush.msra.mxu0 0.0
        %1810 = vmatpush.msra.mxu0 0.0
        %1811 = vmatpush.msra.mxu0 %v1610
        %1812 = vmatpush.msra.mxu0 %v1608
        %1813 = vmatmul.f32.gmra.mxu0 %v1769
        %v1814 = vpop.f32.mrf.mxu0
        %v1815 = vadd.f32 0.0, %v1814
        %1816 = vmatmul.f32.gmra.mxu0 %v1772
        %v1817 = vpop.f32.mrf.mxu0
        %v1818 = vadd.f32 0.0, %v1817
        %1819 = vdwg.mxu0
        %v1820 = vmul.f32 %v1636, %v1792
        %v1821 = vmul.f32 %v1659, %v1815
        %v1822 = vmul.f32 %v1639, %v1795
        %v1823 = vmul.f32 %v1662, %v1818
        %v1824 = vmul.f32 %v1688, %v1740
        %v1825 = vmul.f32 %v1711, %v1763
        %v1826 = vmul.f32 %v1691, %v1743
        %v1827 = vmul.f32 %v1714, %v1766
        %v1828 = vadd.f32 %v1820, %v1824
        %v1829 = vadd.f32 %v1821, %v1825
        %v1830 = vadd.f32 %v1822, %v1826
        %v1831 = vadd.f32 %v1823, %v1827
        %v1832 = vmul.f32 %v1688, %v1792
        %v1833 = vmul.f32 %v1711, %v1815
        %v1834 = vmul.f32 %v1691, %v1795
        %v1835 = vmul.f32 %v1714, %v1818
        %v1836 = vmul.f32 %v1636, %v1740
        %v1837 = vmul.f32 %v1659, %v1763
        %v1838 = vmul.f32 %v1639, %v1743
        %v1839 = vmul.f32 %v1662, %v1766
        %v1840 = vsub.f32 %v1832, %v1836
        %v1841 = vsub.f32 %v1833, %v1837
        %v1842 = vsub.f32 %v1834, %v1838
        %v1843 = vsub.f32 %v1835, %v1839
        %1844 = vst [vmem:[%s307] sm:$0xff] %v1828
        %1845 = vst [vmem:[%s307 + $0x8] sm:$0xff] %v1829
        %s1846 = scalar_lea.vmem %s307, 16 [#allocation12]
        %1847 = vst [vmem:[%s1846] sm:$0xff] %v1840
        %1848 = vst [vmem:[%s1846 + $0x8] sm:$0xff] %v1841
        %s1849 = scalar_lea.vmem %s307, 32 [#allocation12]
        %1850 = vst [vmem:[%s1849] sm:$0xff] %v1830
        %1851 = vst [vmem:[%s1849 + $0x8] sm:$0xff] %v1831
        %s1852 = scalar_lea.vmem %s307, 48 [#allocation12]
        %1853 = vst [vmem:[%s1852] sm:$0xff] %v1842
        %1854 = vst [vmem:[%s1852 + $0x8] sm:$0xff] %v1843
        %s1855 = sand.u32 %s160, 1
        %s1856 = scalar_lea.sflag [#allocation4], %s1855
        %s1857 = sand.u32 %s160, 1
        %s1858 = smul.addr %s1857, 64
        %s1859 = scalar_lea.vmem [#allocation12], %s1858
        // Predicated region
        $region61: #{tpu_custom_call.1} parent=39 // pred_check
          %p1860 = pneg %p170
        $region62: #{tpu_custom_call.1} parent=39 // pred_check_branch
          %1862 = sbr.rel (%p1860) target = $region64
        $region63: #{tpu_custom_call.1} parent=39 // pred_region
          %1864 = vsyncadd %s1856, 0
          %s1865 = smul.addr %s28, 2
          %s1866 = smul.addr %s27, 8
          %s1867 = sadd.s32 %s1865, %s1866
          %s1868 = smul.addr %s1867, 8
          %s1869 = scalar_lea.hbm %s5, %s1868
          %s1870 = sshll.u32 %s1859, 4
          %s1871 = int_to_ptr.vmem [resolvable:$true] %s1870
          %s1872 = sshll.u32 %s1869, 4
          %s1873 = int_to_ptr.hbm [resolvable:$true] %s1872
          %1878 = dma.vmem_to_hbm [thread:$0]  %s1871, 1024, %s1873, %s1856, 256, 256, 16
        $region64: #{tpu_custom_call.1} parent=39 // pred_fallthru
          _
      $region40: #{tpu_custom_call.1} parent=5 // pred_fallthru
        _
      %p1879 = scmp.le.s32.totalorder 2, %s18
      // Predicated region
      $region65: #{tpu_custom_call.1} parent=5 // pred_check
        %p1880 = pneg %p1879
      $region66: #{tpu_custom_call.1} parent=5 // pred_check_branch
        %1882 = sbr.rel (%p1880) target = $region68
      $region67: #{tpu_custom_call.1} parent=5 // pred_region
        %s1883 = ssub.s32 %s18, 2
        // Predicated region
        $region69: #{tpu_custom_call.1} parent=67 // pred_check
          %p1884 = pneg %p176
        $region70: #{tpu_custom_call.1} parent=67 // pred_check_branch
          %1886 = sbr.rel (%p1884) target = $region72
        $region71: #{tpu_custom_call.1} parent=67 // pred_region
          %s1887 = sand.u32 %s161, 1
          %s1888 = scalar_lea.sflag [#allocation4], %s1887
          %s1889 = sand.u32 %s161, 1
          %s1890 = smul.addr %s1889, 64
          %s1891 = scalar_lea.vmem [#allocation12], %s1890
          %1893 = dma.done %s1888, 1024
        $region72: #{tpu_custom_call.1} parent=67 // pred_fallthru
          _
      $region68: #{tpu_custom_call.1} parent=5 // pred_fallthru
        _
    $region6: #{tpu_custom_call.1} parent=1 // loop_footer
      %s22 = sadd.s32 1, %s18
    $region7: #{tpu_custom_call.1} parent=1 // loop_footer_branch
      %17 = sbr.rel target = $region3
    $region8: #{tpu_custom_call.1} parent=1 // loop_exit
      _
    %1894 = vsyncpa [#allocation3], 1
    %s1895 = scalar_lea.sflag [#allocation3], 1
    %1896 = vsyncpa %s1895, 1
    %1897 = vsyncpa [#allocation8], 1
    %1898 = vsyncpa [#allocation11], 1
    %1899 = vsyncpa [#allocation4], 1
    %s1900 = scalar_lea.sflag [#allocation4], 1
    %1901 = vsyncpa %s1900, 1
    %1902 = vsyncpa [#allocation5], 1
    %s1903 = scalar_lea.sflag [#allocation5], 1
    %1904 = vsyncpa %s1903, 1

</llo_original>
